<compile_context>
chip_gen: v6e
topology: v6e:2x2x1
jax: 0.10.0
libtpu: 0.0.40
codegen_flags: <defaults>
</compile_context>

<pallas_src>
import functools

import jax
import jax.numpy as jnp
from jax.experimental import pallas as pl
from jax.experimental.pallas import tpu as pltpu


def _pscn_kernel(depth, out_widths, compute_dtype, *refs):
    """refs layout:
         x_ref,
         w_0 .. w_{depth-1},          (bf16, unsplit, VMEM-resident)
         bias_ref,                    (1, sum(out_widths)) f32, VMEM-resident
         alpha_ref,                   SMEM, shape (1,)
         o_ref
    """
    x_ref = refs[0]
    w_refs = refs[1:1 + depth]
    b_ref = refs[1 + depth]
    alpha_ref = refs[2 + depth]
    o_ref = refs[3 + depth]

    alpha = alpha_ref[0]  # shared scalar PReLU parameter (torch default-arg sharing)

    def prelu(v):  # f32 elementwise on the VPU
        return jnp.where(v > 0, v, alpha * v)

    # In-kernel cast: f32 block from HBM -> bf16 MXU operand (hidden under DMA).
    x = x_ref[...].astype(compute_dtype)

    b_off = 0  # column offset into the concatenated bias
    o_off = 0  # column offset into the output block
    for i in range(depth):
        width = out_widths[i]
        h = prelu(
            jnp.dot(x, w_refs[i][...], preferred_element_type=jnp.float32)
            + b_ref[:, b_off:b_off + width]
        )
        b_off += width
        if i < depth - 1:
            split = width // 2
            # First half -> output (direct store to its static column slice).
            o_ref[:, o_off:o_off + split] = h[:, :split]
            o_off += split
            # Second half -> next (half-width) layer; single cast back to bf16.
            x = h[:, split:].astype(compute_dtype)
        else:
            o_ref[:, o_off:o_off + width] = h


def _round_up(x, m):
    return ((x + m - 1) // m) * m


def _pick_batch_tile(B, block_batch):
    """Batch tile: full batch for small B (block dim == array dim is always legal);
    otherwise a multiple of 256 (MXU rows / sublane legal), capped by block_batch
    (VMEM) and so the grid has >= 2 steps (v7x megacore)."""
    if B <= 256:
        return B
    tb = min(block_batch, _round_up(pl.cdiv(B, 2), 256))
    tb = max(256, (tb // 256) * 256)
    return tb


def pscn_forward(x, weights, bias_cat, alpha, *,
                 block_batch=2048, compute_dtype=jnp.bfloat16):
    """x: (B, input_dim) f32.
       weights[i]: (in_i, out_i) already in compute_dtype (see make_pscn_params).
       bias_cat: (1, sum(out_i)) f32.   alpha: (1,) f32."""
    depth = len(weights)
    B, input_dim = x.shape
    out_widths = tuple(int(w.shape[1]) for w in weights)
    output_dim = out_widths[0]

    tb = _pick_batch_tile(B, block_batch)
    grid = (pl.cdiv(B, tb),)

    resident = lambda i: (0, 0)  # same block every grid step -> stays in VMEM
    in_specs = [pl.BlockSpec((tb, input_dim), lambda i: (i, 0))]
    in_specs += [pl.BlockSpec(w.shape, resident) for w in weights]
    in_specs.append(pl.BlockSpec(bias_cat.shape, resident))
    in_specs.append(pl.BlockSpec(memory_space=pltpu.SMEM))  # alpha scalar

    kernel = functools.partial(_pscn_kernel, depth, out_widths, compute_dtype)

    return pl.pallas_call(
        kernel,
        grid=grid,
        in_specs=in_specs,
        out_specs=pl.BlockSpec((tb, output_dim), lambda i: (i, 0)),
        out_shape=jax.ShapeDtypeStruct((B, output_dim), jnp.float32),
        compiler_params=pltpu.CompilerParams(
            dimension_semantics=("parallel",),
        ),
    )(x, *weights, bias_cat, alpha)


def make_pscn_params(key, input_dim, output_dim, depth, *,
                     compute_dtype=jnp.bfloat16):
    """One-time parameter construction + preprocessing (kaiming-uniform-like init).
    Weights are cast to the MXU compute dtype here; biases are concatenated into a
    single (1, total) f32 row; PReLU alpha = 0.25 (nn.PReLU() default).
    NOTE: torch init sets biases to 0; we use small random biases so the bias path
    is actually exercised by the validation below."""
    min_dim = 2 ** (depth - 1)
    assert depth >= 1
    assert output_dim >= min_dim and output_dim % min_dim == 0

    weights, biases = [], []
    in_dim, out_dim = input_dim, output_dim
    for _ in range(depth):
        key, kw, kb = jax.random.split(key, 3)
        bound = jnp.sqrt(6.0 / in_dim)
        w = jax.random.uniform(kw, (in_dim, out_dim), jnp.float32,
                               minval=-bound, maxval=bound)
        b = 0.1 * jax.random.normal(kb, (1, out_dim), jnp.float32)
        weights.append(w.astype(compute_dtype))        # one-time bf16 cast
        biases.append(b)
        in_dim = out_dim // 2
        out_dim //= 2
    bias_cat = jnp.concatenate(biases, axis=-1)         # (1, sum widths), f32
    alpha = jnp.array([0.25], dtype=jnp.float32)        # shared nn.PReLU() alpha
    return weights, bias_cat, alpha


def pscn_reference(x, weights, bias_cat, alpha, compute_dtype=jnp.bfloat16):
    """Plain-JAX reference mirroring the torch forward with the same
    bf16-matmul / f32-elementwise recipe, for validation."""
    a = alpha[0]
    prelu = lambda v: jnp.where(v > 0, v, a * v)
    depth = len(weights)
    xc = x.astype(compute_dtype)
    parts, b_off = [], 0
    for i, w in enumerate(weights):
        width = int(w.shape[1])
        b = bias_cat[:, b_off:b_off + width]
        b_off += width
        h = prelu(jnp.dot(xc, w, preferred_element_type=jnp.float32) + b)
        if i < depth - 1:
            split = width // 2
            parts.append(h[:, :split])
            xc = h[:, split:].astype(compute_dtype)
        else:
            parts.append(h)
    return jnp.concatenate(parts, axis=-1)


if __name__ == "__main__":
    key = jax.random.PRNGKey(0)

    batch = 512          # -> tb = 256, grid = (2,), both v7x TensorCores active
    input_dim = 48
    output_dim = 32
    depth = 3            # min_dim = 4, 32 % 4 == 0 -> cascade widths 32/16/8

    key, kx = jax.random.split(key)
    x = jax.random.normal(kx, (batch, input_dim), dtype=jnp.float32)

    weights, bias_cat, alpha = make_pscn_params(key, input_dim, output_dim, depth)

    out = pscn_forward(x, weights, bias_cat, alpha)
    out = jax.block_until_ready(out)

    ref = pscn_reference(x, weights, bias_cat, alpha)
    assert out.shape == (batch, output_dim)
    assert jnp.allclose(out, ref, atol=2e-3, rtol=2e-3), (
        f"Pallas output mismatch, max abs diff = {jnp.max(jnp.abs(out - ref))}"
    )

    print("KERNEL_OK")
</pallas_src>

<mosaic_0001>
module attributes {stable_mosaic.version = 11 : i64} {
  func.func @_pscn_kernel(%arg0: i32, %arg1: memref<256x48xf32, #tpu.memory_space<vmem>>, %arg2: memref<48x32xbf16, #tpu.memory_space<vmem>>, %arg3: memref<16x16xbf16, #tpu.memory_space<vmem>>, %arg4: memref<8x8xbf16, #tpu.memory_space<vmem>>, %arg5: memref<1x56xf32, #tpu.memory_space<vmem>>, %arg6: memref<1xf32, #tpu.memory_space<smem>>, %arg7: memref<256x32xf32, #tpu.memory_space<vmem>>) attributes {dimension_semantics = [#tpu.dimension_semantics<parallel>], iteration_bounds = array<i64: 2>, scalar_prefetch = 0 : i64, scratch_operands = 0 : i64, tpu.core_type = #tpu.core_type<tc>, window_params = [{transform_indices = @transform_0, window_bounds = array<i64: 256, 48>}, {pipeline_mode = #tpu.pipeline_mode<synchronous>, transform_indices = @transform_1, window_bounds = array<i64: 48, 32>}, {pipeline_mode = #tpu.pipeline_mode<synchronous>, transform_indices = @transform_2, window_bounds = array<i64: 16, 16>}, {pipeline_mode = #tpu.pipeline_mode<synchronous>, transform_indices = @transform_3, window_bounds = array<i64: 8, 8>}, {pipeline_mode = #tpu.pipeline_mode<synchronous>, transform_indices = @transform_4, window_bounds = array<i64: 1, 56>}, {transform_indices = @transform_5, window_bounds = array<i64: 1>}, {transform_indices = @transform_6, window_bounds = array<i64: 256, 32>}]} {
    %c0 = arith.constant 0 : index
    %0 = memref.load %arg6[%c0] : memref<1xf32, #tpu.memory_space<smem>>
    %c0_0 = arith.constant 0 : index
    %c0_1 = arith.constant 0 : index
    %1 = vector.load %arg1[%c0_0, %c0_1] : memref<256x48xf32, #tpu.memory_space<vmem>>, vector<256x48xf32>
    %2 = arith.truncf %1 : vector<256x48xf32> to vector<256x48xbf16>
    %c0_2 = arith.constant 0 : index
    %c0_3 = arith.constant 0 : index
    %3 = vector.load %arg2[%c0_2, %c0_3] : memref<48x32xbf16, #tpu.memory_space<vmem>>, vector<48x32xbf16>
    %cst = arith.constant dense<0.000000e+00> : vector<256x32xf32>
    %4 = tpu.matmul %2, %3, %cst {dimension_numbers = #tpu.dot_dimension_numbers<[1], [0], [0], [1], [0, 0, 1, 1], [], []>} : vector<256x48xbf16>, vector<48x32xbf16>, vector<256x32xf32> -> vector<256x32xf32>
    %c0_4 = arith.constant 0 : index
    %c0_5 = arith.constant 0 : index
    %5 = vector.load %arg5[%c0_4, %c0_5] : memref<1x56xf32, #tpu.memory_space<vmem>>, vector<1x32xf32>
    %6 = vector.broadcast %5 : vector<1x32xf32> to vector<256x32xf32>
    %7 = arith.addf %4, %6 : vector<256x32xf32>
    %cst_6 = arith.constant 0.000000e+00 : f32
    %8 = vector.broadcast %cst_6 : f32 to vector<256x32xf32>
    %9 = arith.cmpf ogt, %7, %8 : vector<256x32xf32>
    %10 = vector.broadcast %0 : f32 to vector<256x32xf32>
    %11 = arith.mulf %10, %7 : vector<256x32xf32>
    %12 = arith.select %9, %7, %11 : vector<256x32xi1>, vector<256x32xf32>
    %13 = vector.extract_strided_slice %12 {offsets = [0, 0], sizes = [256, 16], strides = [1, 1]} : vector<256x32xf32> to vector<256x16xf32>
    %c0_7 = arith.constant 0 : index
    %c0_8 = arith.constant 0 : index
    %14 = vector.load %arg7[%c0_7, %c0_8] : memref<256x32xf32, #tpu.memory_space<vmem>>, vector<256x16xf32>
    tpu.vector_store %arg7[%c0_7, %c0_8], %13 {strides = array<i32>} : memref<256x32xf32, #tpu.memory_space<vmem>>, vector<256x16xf32>,
    %15 = vector.extract_strided_slice %12 {offsets = [0, 16], sizes = [256, 16], strides = [1, 1]} : vector<256x32xf32> to vector<256x16xf32>
    %16 = arith.truncf %15 : vector<256x16xf32> to vector<256x16xbf16>
    %c0_9 = arith.constant 0 : index
    %c0_10 = arith.constant 0 : index
    %17 = vector.load %arg3[%c0_9, %c0_10] : memref<16x16xbf16, #tpu.memory_space<vmem>>, vector<16x16xbf16>
    %cst_11 = arith.constant dense<0.000000e+00> : vector<256x16xf32>
    %18 = tpu.matmul %16, %17, %cst_11 {dimension_numbers = #tpu.dot_dimension_numbers<[1], [0], [0], [1], [0, 0, 1, 1], [], []>} : vector<256x16xbf16>, vector<16x16xbf16>, vector<256x16xf32> -> vector<256x16xf32>
    %c0_12 = arith.constant 0 : index
    %c32 = arith.constant 32 : index
    %19 = vector.load %arg5[%c0_12, %c32] : memref<1x56xf32, #tpu.memory_space<vmem>>, vector<1x16xf32>
    %20 = vector.broadcast %19 : vector<1x16xf32> to vector<256x16xf32>
    %21 = arith.addf %18, %20 : vector<256x16xf32>
    %cst_13 = arith.constant 0.000000e+00 : f32
    %22 = vector.broadcast %cst_13 : f32 to vector<256x16xf32>
    %23 = arith.cmpf ogt, %21, %22 : vector<256x16xf32>
    %24 = vector.broadcast %0 : f32 to vector<256x16xf32>
    %25 = arith.mulf %24, %21 : vector<256x16xf32>
    %26 = arith.select %23, %21, %25 : vector<256x16xi1>, vector<256x16xf32>
    %27 = vector.extract_strided_slice %26 {offsets = [0, 0], sizes = [256, 8], strides = [1, 1]} : vector<256x16xf32> to vector<256x8xf32>
    %c0_14 = arith.constant 0 : index
    %c16 = arith.constant 16 : index
    %28 = vector.load %arg7[%c0_14, %c16] : memref<256x32xf32, #tpu.memory_space<vmem>>, vector<256x8xf32>
    tpu.vector_store %arg7[%c0_14, %c16], %27 {strides = array<i32>} : memref<256x32xf32, #tpu.memory_space<vmem>>, vector<256x8xf32>,
    %29 = vector.extract_strided_slice %26 {offsets = [0, 8], sizes = [256, 8], strides = [1, 1]} : vector<256x16xf32> to vector<256x8xf32>
    %30 = arith.truncf %29 : vector<256x8xf32> to vector<256x8xbf16>
    %c0_15 = arith.constant 0 : index
    %c0_16 = arith.constant 0 : index
    %31 = vector.load %arg4[%c0_15, %c0_16] : memref<8x8xbf16, #tpu.memory_space<vmem>>, vector<8x8xbf16>
    %cst_17 = arith.constant dense<0.000000e+00> : vector<256x8xf32>
    %32 = tpu.matmul %30, %31, %cst_17 {dimension_numbers = #tpu.dot_dimension_numbers<[1], [0], [0], [1], [0, 0, 1, 1], [], []>} : vector<256x8xbf16>, vector<8x8xbf16>, vector<256x8xf32> -> vector<256x8xf32>
    %c0_18 = arith.constant 0 : index
    %c48 = arith.constant 48 : index
    %33 = vector.load %arg5[%c0_18, %c48] : memref<1x56xf32, #tpu.memory_space<vmem>>, vector<1x8xf32>
    %34 = vector.broadcast %33 : vector<1x8xf32> to vector<256x8xf32>
    %35 = arith.addf %32, %34 : vector<256x8xf32>
    %cst_19 = arith.constant 0.000000e+00 : f32
    %36 = vector.broadcast %cst_19 : f32 to vector<256x8xf32>
    %37 = arith.cmpf ogt, %35, %36 : vector<256x8xf32>
    %38 = vector.broadcast %0 : f32 to vector<256x8xf32>
    %39 = arith.mulf %38, %35 : vector<256x8xf32>
    %40 = arith.select %37, %35, %39 : vector<256x8xi1>, vector<256x8xf32>
    %c0_20 = arith.constant 0 : index
    %c24 = arith.constant 24 : index
    %41 = vector.load %arg7[%c0_20, %c24] : memref<256x32xf32, #tpu.memory_space<vmem>>, vector<256x8xf32>
    tpu.vector_store %arg7[%c0_20, %c24], %40 {strides = array<i32>} : memref<256x32xf32, #tpu.memory_space<vmem>>, vector<256x8xf32>,
    return
  }
  func.func @transform_0(%arg0: i32) -> (i32, i32) {
    %c0_i32 = arith.constant 0 : i32
    %c0_i32_0 = arith.constant 0 : i32
    return %arg0, %c0_i32 : i32, i32
  }
  func.func @transform_1(%arg0: i32) -> (i32, i32) {
    %c0_i32 = arith.constant 0 : i32
    %c0_i32_0 = arith.constant 0 : i32
    %c0_i32_1 = arith.constant 0 : i32
    return %c0_i32, %c0_i32_0 : i32, i32
  }
  func.func @transform_2(%arg0: i32) -> (i32, i32) {
    %c0_i32 = arith.constant 0 : i32
    %c0_i32_0 = arith.constant 0 : i32
    %c0_i32_1 = arith.constant 0 : i32
    return %c0_i32, %c0_i32_0 : i32, i32
  }
  func.func @transform_3(%arg0: i32) -> (i32, i32) {
    %c0_i32 = arith.constant 0 : i32
    %c0_i32_0 = arith.constant 0 : i32
    %c0_i32_1 = arith.constant 0 : i32
    return %c0_i32, %c0_i32_0 : i32, i32
  }
  func.func @transform_4(%arg0: i32) -> (i32, i32) {
    %c0_i32 = arith.constant 0 : i32
    %c0_i32_0 = arith.constant 0 : i32
    %c0_i32_1 = arith.constant 0 : i32
    return %c0_i32, %c0_i32_0 : i32, i32
  }
  func.func @transform_5(%arg0: i32) -> i32 {
    %c0_i32 = arith.constant 0 : i32
    %c0_i32_0 = arith.constant 0 : i32
    return %c0_i32 : i32
  }
  func.func @transform_6(%arg0: i32) -> (i32, i32) {
    %c0_i32 = arith.constant 0 : i32
    %c0_i32_0 = arith.constant 0 : i32
    return %arg0, %c0_i32 : i32, i32
  }
}

</mosaic_0001>

<llo_original>
// kernel: tpu_custom_call.1
$region0: #{tpu_custom_call.1}
  #allocation0 [shape = 'u32[]', space=smem, size = 0x4, offset = 0x4, fixed_abs, tag = 'smem constant byte address 0x4 - core index']
  #allocation1 [shape = 'u32[144,128]{1,0:T(1,128)}', space=vmem, size = 0x12000, scoped, tag = 'internal scratch']
  #allocation2 [shape = 'f32[1]{0:T(128)S(6)}', space=smem, size = 0x200, scoped, tag = 'scoped memory for tpu_custom_call.1']
  %s0 = inlined_call_operand.vmem [shape: f32[512,48], index: 0, kind: input, shape index: {}]
  %s1 = inlined_call_operand.vmem [shape: bf16[48,32], index: 1, kind: input, shape index: {}]
  %s2 = inlined_call_operand.vmem [shape: bf16[16,16], index: 2, kind: input, shape index: {}]
  %s3 = inlined_call_operand.vmem [shape: bf16[8,8], index: 3, kind: input, shape index: {}]
  %s4 = inlined_call_operand.vmem [shape: f32[1,56], index: 4, kind: input, shape index: {}]
  %s5 = inlined_call_operand.<no memory space> [shape: f32[1], index: 5, kind: input, shape index: {}]
  %s6 = inlined_call_operand.vmem [shape: f32[512,32], index: 6, kind: output, shape index: {}]
  %s7 = sld [smem:[#allocation0]]
  $region57: #{tpu_custom_call.1} parent=0
    _
  %s9 = ssub.s32 1, %s7
  %s10 = scalar_select 0, %s9, %s7
  %11 = sst [smem:[#allocation2]] %s5
  loop: start=0, step=1, limit=4
  $region2: #{tpu_custom_call.1} parent=0 // loop_pre_header
    _
  $region3: #{tpu_custom_call.1} parent=0 // loop_header
    %s13 = sphi 0, %s17
    %p14 = scmp.ge.s32.totalorder %s13, 4
    %s23 = sphi 0, %s25
    %s26 = sphi 0, %s23
    %s27 = sphi 0, %s26
    %s43 = sphi 0, %s27
    %s47 = sphi 0, %s47
    %s49 = sphi 0, %s47
    %s50 = sphi 0, %s49
    %s64 = sphi 0, %s50
    %s68 = sphi 0, %s68
    %s70 = sphi 0, %s68
    %s71 = sphi 0, %s70
    %s85 = sphi 0, %s71
    %s89 = sphi 0, %s89
    %s91 = sphi 0, %s89
    %s92 = sphi 0, %s91
    %s106 = sphi 0, %s92
    %s110 = sphi 0, %s110
    %s112 = sphi 0, %s110
    %s113 = sphi 0, %s112
    %s127 = sphi 0, %s113
    %s131 = sphi 0, %s131
    %s133 = sphi 0, %s131
    %s134 = sphi 0, %s133
    %s148 = sphi 0, %s134
    %s154 = sphi 0, %s156
    %s157 = sphi 0, %s154
    %s158 = sphi 0, %s157
    %s174 = sphi 0, %s158
  $region4: #{tpu_custom_call.1} parent=0 // loop_header_branch
    %16 = sbr.rel (%p14) target = $region8
  $region5: #{tpu_custom_call.1} parent=0 // loop_body
    %s18 = ssub.s32 %s13, 1
    %s19 = ssub.s32 %s13, 2
    %s20 = sadd.s32 %s13, 1
    %s21 = ssub.s32 %s13, %s20
    %p22 = scmp.eq.s32.totalorder %s21, 0
    %s24 = sadd.s32 %s23, 1
    %s25 = scalar_select %p22, %s23, %s24
    %p28 = pneg %p22
    %p29 = scmp.eq.s32.totalorder %s13, 1
    %p30 = por %p28, %p29
    %p31 = scmp.ne.s32.totalorder %s23, %s26
    %p32 = scmp.eq.s32.totalorder %s13, 0
    %p33 = por %p31, %p32
    %p34 = scmp.ne.s32.totalorder %s23, %s26
    %p35 = scmp.eq.s32.totalorder %s18, 1
    %p36 = por %p34, %p35
    %p37 = scmp.ne.s32.totalorder %s26, %s27
    %p38 = scmp.eq.s32.totalorder %s18, 0
    %p39 = por %p37, %p38
    %p40 = scmp.ne.s32.totalorder %s26, %s27
    %p41 = scmp.eq.s32.totalorder %s19, 1
    %p42 = por %p40, %p41
    %p44 = scmp.ne.s32.totalorder %s27, %s43
    %p45 = scmp.eq.s32.totalorder %s19, 0
    %p46 = por %p44, %p45
    %s48 = sadd.s32 %s47, 1
    %p51 = scmp.eq.s32.totalorder %s13, 1
    %p52 = scmp.ne.s32.totalorder %s47, %s49
    %p53 = scmp.eq.s32.totalorder %s13, 0
    %p54 = por %p52, %p53
    %p55 = scmp.ne.s32.totalorder %s47, %s49
    %p56 = scmp.eq.s32.totalorder %s18, 1
    %p57 = por %p55, %p56
    %p58 = scmp.ne.s32.totalorder %s49, %s50
    %p59 = scmp.eq.s32.totalorder %s18, 0
    %p60 = por %p58, %p59
    %p61 = scmp.ne.s32.totalorder %s49, %s50
    %p62 = scmp.eq.s32.totalorder %s19, 1
    %p63 = por %p61, %p62
    %p65 = scmp.ne.s32.totalorder %s50, %s64
    %p66 = scmp.eq.s32.totalorder %s19, 0
    %p67 = por %p65, %p66
    %s69 = sadd.s32 %s68, 1
    %p72 = scmp.eq.s32.totalorder %s13, 1
    %p73 = scmp.ne.s32.totalorder %s68, %s70
    %p74 = scmp.eq.s32.totalorder %s13, 0
    %p75 = por %p73, %p74
    %p76 = scmp.ne.s32.totalorder %s68, %s70
    %p77 = scmp.eq.s32.totalorder %s18, 1
    %p78 = por %p76, %p77
    %p79 = scmp.ne.s32.totalorder %s70, %s71
    %p80 = scmp.eq.s32.totalorder %s18, 0
    %p81 = por %p79, %p80
    %p82 = scmp.ne.s32.totalorder %s70, %s71
    %p83 = scmp.eq.s32.totalorder %s19, 1
    %p84 = por %p82, %p83
    %p86 = scmp.ne.s32.totalorder %s71, %s85
    %p87 = scmp.eq.s32.totalorder %s19, 0
    %p88 = por %p86, %p87
    %s90 = sadd.s32 %s89, 1
    %p93 = scmp.eq.s32.totalorder %s13, 1
    %p94 = scmp.ne.s32.totalorder %s89, %s91
    %p95 = scmp.eq.s32.totalorder %s13, 0
    %p96 = por %p94, %p95
    %p97 = scmp.ne.s32.totalorder %s89, %s91
    %p98 = scmp.eq.s32.totalorder %s18, 1
    %p99 = por %p97, %p98
    %p100 = scmp.ne.s32.totalorder %s91, %s92
    %p101 = scmp.eq.s32.totalorder %s18, 0
    %p102 = por %p100, %p101
    %p103 = scmp.ne.s32.totalorder %s91, %s92
    %p104 = scmp.eq.s32.totalorder %s19, 1
    %p105 = por %p103, %p104
    %p107 = scmp.ne.s32.totalorder %s92, %s106
    %p108 = scmp.eq.s32.totalorder %s19, 0
    %p109 = por %p107, %p108
    %s111 = sadd.s32 %s110, 1
    %p114 = scmp.eq.s32.totalorder %s13, 1
    %p115 = scmp.ne.s32.totalorder %s110, %s112
    %p116 = scmp.eq.s32.totalorder %s13, 0
    %p117 = por %p115, %p116
    %p118 = scmp.ne.s32.totalorder %s110, %s112
    %p119 = scmp.eq.s32.totalorder %s18, 1
    %p120 = por %p118, %p119
    %p121 = scmp.ne.s32.totalorder %s112, %s113
    %p122 = scmp.eq.s32.totalorder %s18, 0
    %p123 = por %p121, %p122
    %p124 = scmp.ne.s32.totalorder %s112, %s113
    %p125 = scmp.eq.s32.totalorder %s19, 1
    %p126 = por %p124, %p125
    %p128 = scmp.ne.s32.totalorder %s113, %s127
    %p129 = scmp.eq.s32.totalorder %s19, 0
    %p130 = por %p128, %p129
    %s132 = sadd.s32 %s131, 1
    %p135 = scmp.eq.s32.totalorder %s13, 1
    %p136 = scmp.ne.s32.totalorder %s131, %s133
    %p137 = scmp.eq.s32.totalorder %s13, 0
    %p138 = por %p136, %p137
    %p139 = scmp.ne.s32.totalorder %s131, %s133
    %p140 = scmp.eq.s32.totalorder %s18, 1
    %p141 = por %p139, %p140
    %p142 = scmp.ne.s32.totalorder %s133, %s134
    %p143 = scmp.eq.s32.totalorder %s18, 0
    %p144 = por %p142, %p143
    %p145 = scmp.ne.s32.totalorder %s133, %s134
    %p146 = scmp.eq.s32.totalorder %s19, 1
    %p147 = por %p145, %p146
    %p149 = scmp.ne.s32.totalorder %s134, %s148
    %p150 = scmp.eq.s32.totalorder %s19, 0
    %p151 = por %p149, %p150
    %s152 = ssub.s32 %s13, %s20
    %p153 = scmp.eq.s32.totalorder %s152, 0
    %s155 = sadd.s32 %s154, 1
    %s156 = scalar_select %p153, %s154, %s155
    %p159 = pneg %p153
    %p160 = scmp.eq.s32.totalorder %s13, 1
    %p161 = por %p159, %p160
    %p162 = scmp.ne.s32.totalorder %s154, %s157
    %p163 = scmp.eq.s32.totalorder %s13, 0
    %p164 = por %p162, %p163
    %p165 = scmp.ne.s32.totalorder %s154, %s157
    %p166 = scmp.eq.s32.totalorder %s18, 1
    %p167 = por %p165, %p166
    %p168 = scmp.ne.s32.totalorder %s157, %s158
    %p169 = scmp.eq.s32.totalorder %s18, 0
    %p170 = por %p168, %p169
    %p171 = scmp.ne.s32.totalorder %s157, %s158
    %p172 = scmp.eq.s32.totalorder %s19, 1
    %p173 = por %p171, %p172
    %p175 = scmp.ne.s32.totalorder %s158, %s174
    %p176 = scmp.eq.s32.totalorder %s19, 0
    %p177 = por %p175, %p176
    %p178 = scmp.le.s32.totalorder 1, %s13
    %p179 = scmp.lt.s32.totalorder %s13, 3
    %p180 = pnand %p178, %p179
    %p181 = pneg %p180
    // Predicated region
    $region9: #{tpu_custom_call.1} parent=5 // pred_check
      _
    $region10: #{tpu_custom_call.1} parent=5 // pred_check_branch
      %183 = sbr.rel (%p180) target = $region12
    $region11: #{tpu_custom_call.1} parent=5 // pred_region
      %s184 = ssub.s32 %s13, 1
      // Predicated region
      $region13: #{tpu_custom_call.1} parent=11 // pred_check
        %p185 = pneg %p60
      $region14: #{tpu_custom_call.1} parent=11 // pred_check_branch
        %187 = sbr.rel (%p185) target = $region16
      $region15: #{tpu_custom_call.1} parent=11 // pred_region
        _
      $region16: #{tpu_custom_call.1} parent=11 // pred_fallthru
        _
      // Predicated region
      $region17: #{tpu_custom_call.1} parent=11 // pred_check
        %p188 = pneg %p81
      $region18: #{tpu_custom_call.1} parent=11 // pred_check_branch
        %190 = sbr.rel (%p188) target = $region20
      $region19: #{tpu_custom_call.1} parent=11 // pred_region
        _
      $region20: #{tpu_custom_call.1} parent=11 // pred_fallthru
        _
      // Predicated region
      $region21: #{tpu_custom_call.1} parent=11 // pred_check
        %p191 = pneg %p102
      $region22: #{tpu_custom_call.1} parent=11 // pred_check_branch
        %193 = sbr.rel (%p191) target = $region24
      $region23: #{tpu_custom_call.1} parent=11 // pred_region
        _
      $region24: #{tpu_custom_call.1} parent=11 // pred_fallthru
        _
      // Predicated region
      $region25: #{tpu_custom_call.1} parent=11 // pred_check
        %p194 = pneg %p123
      $region26: #{tpu_custom_call.1} parent=11 // pred_check_branch
        %196 = sbr.rel (%p194) target = $region28
      $region27: #{tpu_custom_call.1} parent=11 // pred_region
        _
      $region28: #{tpu_custom_call.1} parent=11 // pred_fallthru
        _
      // Predicated region
      $region29: #{tpu_custom_call.1} parent=11 // pred_check
        %p197 = pneg %p144
      $region30: #{tpu_custom_call.1} parent=11 // pred_check_branch
        %199 = sbr.rel (%p197) target = $region32
      $region31: #{tpu_custom_call.1} parent=11 // pred_region
        _
      $region32: #{tpu_custom_call.1} parent=11 // pred_fallthru
        _
    $region12: #{tpu_custom_call.1} parent=5 // pred_fallthru
      _
    %p200 = scmp.lt.s32.totalorder %s13, 2
    // Predicated region
    $region33: #{tpu_custom_call.1} parent=5 // pred_check
      %p201 = pneg %p200
    $region34: #{tpu_custom_call.1} parent=5 // pred_check_branch
      %203 = sbr.rel (%p201) target = $region36
    $region35: #{tpu_custom_call.1} parent=5 // pred_region
      // Predicated region
      $region37: #{tpu_custom_call.1} parent=35 // pred_check
        %p204 = pneg %p33
      $region38: #{tpu_custom_call.1} parent=35 // pred_check_branch
        %206 = sbr.rel (%p204) target = $region40
      $region39: #{tpu_custom_call.1} parent=35 // pred_region
        %s207 = smul.u32 32, %s13
        %p208 = scmp.lt.s32.totalorder %s207, 63
        %s209 = scalar_select %p208, %s207, 63
        %s210 = smul.addr %s209, 8
        %s211 = scalar_lea.vmem %s0, %s210
        %s212 = smul.u32 32, %s13
      $region40: #{tpu_custom_call.1} parent=35 // pred_fallthru
        _
    $region36: #{tpu_custom_call.1} parent=5 // pred_fallthru
      _
    %p213 = scmp.le.s32.totalorder 1, %s13
    %p214 = scmp.lt.s32.totalorder %s13, 3
    %p215 = pnand %p213, %p214
    %p216 = pneg %p215
    // Predicated region
    $region41: #{tpu_custom_call.1} parent=5 // pred_check
      _
    $region42: #{tpu_custom_call.1} parent=5 // pred_check_branch
      %218 = sbr.rel (%p215) target = $region44
    $region43: #{tpu_custom_call.1} parent=5 // pred_region
      %s219 = ssub.s32 %s13, 1
      %s220 = smul.u32 32, %s18
      %p221 = scmp.lt.s32.totalorder %s220, 63
      %s222 = scalar_select %p221, %s220, 63
      %s223 = smul.addr %s222, 8
      %s224 = scalar_lea.vmem %s0, %s223
      %p225 = pneg %p39
      %p226 = pneg %p36
      %p227 = pneg %p60
      %p228 = pneg %p57
      %p229 = pneg %p81
      %p230 = pneg %p78
      %p231 = pneg %p102
      %p232 = pneg %p99
      %p233 = pneg %p123
      %p234 = pneg %p120
      %p235 = pneg %p144
      %p236 = pneg %p141
      %p237 = pneg %p170
      %p238 = pneg %p167
      %s239 = smul.u32 32, %s18
      %p240 = scmp.lt.s32.totalorder %s239, 63
      %s241 = scalar_select %p240, %s239, 63
      %s242 = smul.addr %s241, 8
      %s243 = scalar_lea.vmem %s6, %s242
      %s244 = smul.u32 32, %s18
      %p245 = scmp.lt.s32.totalorder %s244, 63
      %s246 = scalar_select %p245, %s244, 63
      %s247 = smul.addr %s246, 8
      %s248 = scalar_lea.vmem %s0, %s247
      %s249 = smul.u32 32, %s18
      %s250 = smul.u32 32, %s18
      %p251 = scmp.lt.s32.totalorder %s250, 63
      %s252 = scalar_select %p251, %s250, 63
      %s253 = smul.addr %s252, 8
      %s254 = scalar_lea.vmem %s6, %s253
      %s255 = smul.u32 32, %s18
      %s257 = sld [smem:[#allocation2]]
      %v258 = vld [vmem:[%s248] sm:$0xff]
      %v259 = vld [vmem:[%s248 + $0x8] sm:$0xff]
      %v260 = vld [vmem:[%s248 + $0x10] sm:$0xff]
      %v261 = vld [vmem:[%s248 + $0x18] sm:$0xff]
      %v262 = vld [vmem:[%s248 + $0x20] sm:$0xff]
      %v263 = vld [vmem:[%s248 + $0x28] sm:$0xff]
      %v264 = vld [vmem:[%s248 + $0x30] sm:$0xff]
      %v265 = vld [vmem:[%s248 + $0x38] sm:$0xff]
      %v266 = vld [vmem:[%s248 + $0x40] sm:$0xff]
      %v267 = vld [vmem:[%s248 + $0x48] sm:$0xff]
      %v268 = vld [vmem:[%s248 + $0x50] sm:$0xff]
      %v269 = vld [vmem:[%s248 + $0x58] sm:$0xff]
      %v270 = vld [vmem:[%s248 + $0x60] sm:$0xff]
      %v271 = vld [vmem:[%s248 + $0x68] sm:$0xff]
      %v272 = vld [vmem:[%s248 + $0x70] sm:$0xff]
      %v273 = vld [vmem:[%s248 + $0x78] sm:$0xff]
      %v274 = vld [vmem:[%s248 + $0x80] sm:$0xff]
      %v275 = vld [vmem:[%s248 + $0x88] sm:$0xff]
      %v276 = vld [vmem:[%s248 + $0x90] sm:$0xff]
      %v277 = vld [vmem:[%s248 + $0x98] sm:$0xff]
      %v278 = vld [vmem:[%s248 + $0xa0] sm:$0xff]
      %v279 = vld [vmem:[%s248 + $0xa8] sm:$0xff]
      %v280 = vld [vmem:[%s248 + $0xb0] sm:$0xff]
      %v281 = vld [vmem:[%s248 + $0xb8] sm:$0xff]
      %v282 = vld [vmem:[%s248 + $0xc0] sm:$0xff]
      %v283 = vld [vmem:[%s248 + $0xc8] sm:$0xff]
      %v284 = vld [vmem:[%s248 + $0xd0] sm:$0xff]
      %v285 = vld [vmem:[%s248 + $0xd8] sm:$0xff]
      %v286 = vld [vmem:[%s248 + $0xe0] sm:$0xff]
      %v287 = vld [vmem:[%s248 + $0xe8] sm:$0xff]
      %v288 = vld [vmem:[%s248 + $0xf0] sm:$0xff]
      %v289 = vld [vmem:[%s248 + $0xf8] sm:$0xff]
      %v290 = vpack.c.bf16 %v259, %v258
      %v291 = vpack.c.bf16 %v261, %v260
      %v292 = vpack.c.bf16 %v263, %v262
      %v293 = vpack.c.bf16 %v265, %v264
      %v294 = vpack.c.bf16 %v267, %v266
      %v295 = vpack.c.bf16 %v269, %v268
      %v296 = vpack.c.bf16 %v271, %v270
      %v297 = vpack.c.bf16 %v273, %v272
      %v298 = vpack.c.bf16 %v275, %v274
      %v299 = vpack.c.bf16 %v277, %v276
      %v300 = vpack.c.bf16 %v279, %v278
      %v301 = vpack.c.bf16 %v281, %v280
      %v302 = vpack.c.bf16 %v283, %v282
      %v303 = vpack.c.bf16 %v285, %v284
      %v304 = vpack.c.bf16 %v287, %v286
      %v305 = vpack.c.bf16 %v289, %v288
      %v306 = vld [vmem:[%s1] sm:$0xf]
      %v307 = vld [vmem:[%s1 + $0x4] sm:$0xf]
      %v308 = vld [vmem:[%s1 + $0x8] sm:$0xf]
      %v309 = vld [vmem:[%s1 + $0xc] sm:$0xf]
      %v310 = vld [vmem:[%s1 + $0x10] sm:$0xf]
      %v311 = vld [vmem:[%s1 + $0x14] sm:$0xf]
      %v312 = vld [vmem:[%s4] sm:$0x1]
      %v314 = vlaneseq
      %v315 = vshrl.u32 %v314, 7
      %v316 = vsub.s32 0, %v315
      %v317 = vrot.slane %v312, %v316
      %v325 = vunpack.c.l.b16 %v306
      %v326 = vunpack.c.l.b16 %v307
      %v327 = vunpack.c.l.b16 %v308
      %v328 = vunpack.c.l.b16 %v309
      %v329 = vunpack.c.l.b16 %v310
      %v330 = vunpack.c.l.b16 %v311
      %v331 = vpack.c.b16 %v326, %v325
      %v332 = vpack.c.b16 %v328, %v327
      %v333 = vpack.c.b16 %v330, %v329
      %vm337 = vcmask 392192
      %v339 = vsel %vm337, %v290, 0
      %v342 = vsel %vm337, %v291, 0
      %v345 = vsel %vm337, %v292, 0
      %v348 = vsel %vm337, %v293, 0
      %v351 = vsel %vm337, %v294, 0
      %v354 = vsel %vm337, %v295, 0
      %v357 = vsel %vm337, %v296, 0
      %v360 = vsel %vm337, %v297, 0
      %v363 = vsel %vm337, %v298, 0
      %v366 = vsel %vm337, %v299, 0
      %v369 = vsel %vm337, %v300, 0
      %v372 = vsel %vm337, %v301, 0
      %v375 = vsel %vm337, %v302, 0
      %v378 = vsel %vm337, %v303, 0
      %v381 = vsel %vm337, %v304, 0
      %v384 = vsel %vm337, %v305, 0
      %386 = vmatprep.subr.bf16.mxu0 0
      %387 = vmatpush1.bf16.msra.mxu0 0
      %388 = vmatprep.subr.bf16.mxu0 0
      %389 = vmatpush1.bf16.msra.mxu0 0
      %390 = vmatprep.subr.bf16.mxu0 0
      %391 = vmatpush1.bf16.msra.mxu0 0
      %392 = vmatprep.subr.bf16.mxu0 0
      %393 = vmatpush1.bf16.msra.mxu0 0
      %394 = vmatprep.subr.bf16.mxu0 0
      %395 = vmatpush1.bf16.msra.mxu0 0
      %396 = vmatprep.subr.bf16.mxu0 0
      %397 = vmatpush1.bf16.msra.mxu0 %v333
      %398 = vmatprep.subr.bf16.mxu0 0
      %399 = vmatpush1.bf16.msra.mxu0 %v332
      %400 = vmatprep.subr.bf16.mxu0 0
      %401 = vmatpush1.bf16.msra.mxu0 %v331
      %402 = vmatprep.subr.bf16.mxu0 0
      %403 = vmatpush2.bf16.msra.mxu0 0
      %404 = vmatprep.subr.bf16.mxu0 0
      %405 = vmatpush2.bf16.msra.mxu0 0
      %406 = vmatprep.subr.bf16.mxu0 0
      %407 = vmatpush2.bf16.msra.mxu0 0
      %408 = vmatprep.subr.bf16.mxu0 0
      %409 = vmatpush2.bf16.msra.mxu0 0
      %410 = vmatprep.subr.bf16.mxu0 0
      %411 = vmatpush2.bf16.msra.mxu0 0
      %412 = vmatprep.subr.bf16.mxu0 0
      %413 = vmatpush2.bf16.msra.mxu0 0
      %414 = vmatprep.subr.bf16.mxu0 0
      %415 = vmatpush2.bf16.msra.mxu0 0
      %416 = vmatprep.subr.bf16.mxu0 0
      %417 = vmatpush2.bf16.msra.mxu0 0
      %418 = vmatprep.mubr.bf16.mxu0 0
      %419 = vmatmul.mubr.bf16.gmra.mxu0 %v339
      %v420 = vpop.f32.mrf.mxu0
      %v421 = vadd.f32 %v317, %v420
      %v422 = vpop.f32.mrf.mxu0
      %v423 = vpop.f32.mrf.mxu0
      %v424 = vadd.f32 %v317, %v423
      %v425 = vpop.f32.mrf.mxu0
      %426 = vmatprep.mubr.bf16.mxu0 0
      %427 = vmatmul.mubr.bf16.gmra.mxu0 %v342
      %v428 = vpop.f32.mrf.mxu0
      %v429 = vadd.f32 %v317, %v428
      %v430 = vpop.f32.mrf.mxu0
      %v431 = vpop.f32.mrf.mxu0
      %v432 = vadd.f32 %v317, %v431
      %v433 = vpop.f32.mrf.mxu0
      %434 = vmatprep.mubr.bf16.mxu0 0
      %435 = vmatmul.mubr.bf16.gmra.mxu0 %v345
      %v436 = vpop.f32.mrf.mxu0
      %v437 = vadd.f32 %v317, %v436
      %v438 = vpop.f32.mrf.mxu0
      %v439 = vpop.f32.mrf.mxu0
      %v440 = vadd.f32 %v317, %v439
      %v441 = vpop.f32.mrf.mxu0
      %442 = vmatprep.mubr.bf16.mxu0 0
      %443 = vmatmul.mubr.bf16.gmra.mxu0 %v348
      %v444 = vpop.f32.mrf.mxu0
      %v445 = vadd.f32 %v317, %v444
      %v446 = vpop.f32.mrf.mxu0
      %v447 = vpop.f32.mrf.mxu0
      %v448 = vadd.f32 %v317, %v447
      %v449 = vpop.f32.mrf.mxu0
      %450 = vmatprep.mubr.bf16.mxu0 0
      %451 = vmatmul.mubr.bf16.gmra.mxu0 %v351
      %v452 = vpop.f32.mrf.mxu0
      %v453 = vadd.f32 %v317, %v452
      %v454 = vpop.f32.mrf.mxu0
      %v455 = vpop.f32.mrf.mxu0
      %v456 = vadd.f32 %v317, %v455
      %v457 = vpop.f32.mrf.mxu0
      %458 = vmatprep.mubr.bf16.mxu0 0
      %459 = vmatmul.mubr.bf16.gmra.mxu0 %v354
      %v460 = vpop.f32.mrf.mxu0
      %v461 = vadd.f32 %v317, %v460
      %v462 = vpop.f32.mrf.mxu0
      %v463 = vpop.f32.mrf.mxu0
      %v464 = vadd.f32 %v317, %v463
      %v465 = vpop.f32.mrf.mxu0
      %466 = vmatprep.mubr.bf16.mxu0 0
      %467 = vmatmul.mubr.bf16.gmra.mxu0 %v357
      %v468 = vpop.f32.mrf.mxu0
      %v469 = vadd.f32 %v317, %v468
      %v470 = vpop.f32.mrf.mxu0
      %v471 = vpop.f32.mrf.mxu0
      %v472 = vadd.f32 %v317, %v471
      %v473 = vpop.f32.mrf.mxu0
      %474 = vmatprep.mubr.bf16.mxu0 0
      %475 = vmatmul.mubr.bf16.gmra.mxu0 %v360
      %v476 = vpop.f32.mrf.mxu0
      %v477 = vadd.f32 %v317, %v476
      %v478 = vpop.f32.mrf.mxu0
      %v479 = vpop.f32.mrf.mxu0
      %v480 = vadd.f32 %v317, %v479
      %v481 = vpop.f32.mrf.mxu0
      %482 = vmatprep.mubr.bf16.mxu0 0
      %483 = vmatmul.mubr.bf16.gmra.mxu0 %v363
      %v484 = vpop.f32.mrf.mxu0
      %v485 = vadd.f32 %v317, %v484
      %v486 = vpop.f32.mrf.mxu0
      %v487 = vpop.f32.mrf.mxu0
      %v488 = vadd.f32 %v317, %v487
      %v489 = vpop.f32.mrf.mxu0
      %490 = vmatprep.mubr.bf16.mxu0 0
      %491 = vmatmul.mubr.bf16.gmra.mxu0 %v366
      %v492 = vpop.f32.mrf.mxu0
      %v493 = vadd.f32 %v317, %v492
      %v494 = vpop.f32.mrf.mxu0
      %v495 = vpop.f32.mrf.mxu0
      %v496 = vadd.f32 %v317, %v495
      %v497 = vpop.f32.mrf.mxu0
      %498 = vmatprep.mubr.bf16.mxu0 0
      %499 = vmatmul.mubr.bf16.gmra.mxu0 %v369
      %v500 = vpop.f32.mrf.mxu0
      %v501 = vadd.f32 %v317, %v500
      %v502 = vpop.f32.mrf.mxu0
      %v503 = vpop.f32.mrf.mxu0
      %v504 = vadd.f32 %v317, %v503
      %v505 = vpop.f32.mrf.mxu0
      %506 = vmatprep.mubr.bf16.mxu0 0
      %507 = vmatmul.mubr.bf16.gmra.mxu0 %v372
      %v508 = vpop.f32.mrf.mxu0
      %v509 = vadd.f32 %v317, %v508
      %v510 = vpop.f32.mrf.mxu0
      %v511 = vpop.f32.mrf.mxu0
      %v512 = vadd.f32 %v317, %v511
      %v513 = vpop.f32.mrf.mxu0
      %514 = vmatprep.mubr.bf16.mxu0 0
      %515 = vmatmul.mubr.bf16.gmra.mxu0 %v375
      %v516 = vpop.f32.mrf.mxu0
      %v517 = vadd.f32 %v317, %v516
      %v518 = vpop.f32.mrf.mxu0
      %v519 = vpop.f32.mrf.mxu0
      %v520 = vadd.f32 %v317, %v519
      %v521 = vpop.f32.mrf.mxu0
      %522 = vmatprep.mubr.bf16.mxu0 0
      %523 = vmatmul.mubr.bf16.gmra.mxu0 %v378
      %v524 = vpop.f32.mrf.mxu0
      %v525 = vadd.f32 %v317, %v524
      %v526 = vpop.f32.mrf.mxu0
      %v527 = vpop.f32.mrf.mxu0
      %v528 = vadd.f32 %v317, %v527
      %v529 = vpop.f32.mrf.mxu0
      %530 = vmatprep.mubr.bf16.mxu0 0
      %531 = vmatmul.mubr.bf16.gmra.mxu0 %v381
      %v532 = vpop.f32.mrf.mxu0
      %v533 = vadd.f32 %v317, %v532
      %v534 = vpop.f32.mrf.mxu0
      %v535 = vpop.f32.mrf.mxu0
      %v536 = vadd.f32 %v317, %v535
      %v537 = vpop.f32.mrf.mxu0
      %538 = vmatprep.mubr.bf16.mxu0 0
      %539 = vmatmul.mubr.bf16.gmra.mxu0 %v384
      %v540 = vpop.f32.mrf.mxu0
      %v541 = vadd.f32 %v317, %v540
      %v542 = vpop.f32.mrf.mxu0
      %v543 = vpop.f32.mrf.mxu0
      %v544 = vadd.f32 %v317, %v543
      %v545 = vpop.f32.mrf.mxu0
      %546 = vdwg.mxu0
      %vm547 = vcmp.gt.f32.partialorder %v421, 0.0
      %vm548 = vcmp.gt.f32.partialorder %v424, 0.0
      %vm549 = vcmp.gt.f32.partialorder %v429, 0.0
      %vm550 = vcmp.gt.f32.partialorder %v432, 0.0
      %vm551 = vcmp.gt.f32.partialorder %v437, 0.0
      %vm552 = vcmp.gt.f32.partialorder %v440, 0.0
      %vm553 = vcmp.gt.f32.partialorder %v445, 0.0
      %vm554 = vcmp.gt.f32.partialorder %v448, 0.0
      %vm555 = vcmp.gt.f32.partialorder %v453, 0.0
      %vm556 = vcmp.gt.f32.partialorder %v456, 0.0
      %vm557 = vcmp.gt.f32.partialorder %v461, 0.0
      %vm558 = vcmp.gt.f32.partialorder %v464, 0.0
      %vm559 = vcmp.gt.f32.partialorder %v469, 0.0
      %vm560 = vcmp.gt.f32.partialorder %v472, 0.0
      %vm561 = vcmp.gt.f32.partialorder %v477, 0.0
      %vm562 = vcmp.gt.f32.partialorder %v480, 0.0
      %vm563 = vcmp.gt.f32.partialorder %v485, 0.0
      %vm564 = vcmp.gt.f32.partialorder %v488, 0.0
      %vm565 = vcmp.gt.f32.partialorder %v493, 0.0
      %vm566 = vcmp.gt.f32.partialorder %v496, 0.0
      %vm567 = vcmp.gt.f32.partialorder %v501, 0.0
      %vm568 = vcmp.gt.f32.partialorder %v504, 0.0
      %vm569 = vcmp.gt.f32.partialorder %v509, 0.0
      %vm570 = vcmp.gt.f32.partialorder %v512, 0.0
      %vm571 = vcmp.gt.f32.partialorder %v517, 0.0
      %vm572 = vcmp.gt.f32.partialorder %v520, 0.0
      %vm573 = vcmp.gt.f32.partialorder %v525, 0.0
      %vm574 = vcmp.gt.f32.partialorder %v528, 0.0
      %vm575 = vcmp.gt.f32.partialorder %v533, 0.0
      %vm576 = vcmp.gt.f32.partialorder %v536, 0.0
      %vm577 = vcmp.gt.f32.partialorder %v541, 0.0
      %vm578 = vcmp.gt.f32.partialorder %v544, 0.0
      %v579 = vstv %s257
      %v580 = vmul.f32 %v579, %v421
      %v581 = vmul.f32 %v579, %v424
      %v582 = vmul.f32 %v579, %v429
      %v583 = vmul.f32 %v579, %v432
      %v584 = vmul.f32 %v579, %v437
      %v585 = vmul.f32 %v579, %v440
      %v586 = vmul.f32 %v579, %v445
      %v587 = vmul.f32 %v579, %v448
      %v588 = vmul.f32 %v579, %v453
      %v589 = vmul.f32 %v579, %v456
      %v590 = vmul.f32 %v579, %v461
      %v591 = vmul.f32 %v579, %v464
      %v592 = vmul.f32 %v579, %v469
      %v593 = vmul.f32 %v579, %v472
      %v594 = vmul.f32 %v579, %v477
      %v595 = vmul.f32 %v579, %v480
      %v596 = vmul.f32 %v579, %v485
      %v597 = vmul.f32 %v579, %v488
      %v598 = vmul.f32 %v579, %v493
      %v599 = vmul.f32 %v579, %v496
      %v600 = vmul.f32 %v579, %v501
      %v601 = vmul.f32 %v579, %v504
      %v602 = vmul.f32 %v579, %v509
      %v603 = vmul.f32 %v579, %v512
      %v604 = vmul.f32 %v579, %v517
      %v605 = vmul.f32 %v579, %v520
      %v606 = vmul.f32 %v579, %v525
      %v607 = vmul.f32 %v579, %v528
      %v608 = vmul.f32 %v579, %v533
      %v609 = vmul.f32 %v579, %v536
      %v610 = vmul.f32 %v579, %v541
      %v611 = vmul.f32 %v579, %v544
      %v612 = vsel %vm547, %v421, %v580
      %v613 = vsel %vm548, %v424, %v581
      %v614 = vsel %vm549, %v429, %v582
      %v615 = vsel %vm550, %v432, %v583
      %v616 = vsel %vm551, %v437, %v584
      %v617 = vsel %vm552, %v440, %v585
      %v618 = vsel %vm553, %v445, %v586
      %v619 = vsel %vm554, %v448, %v587
      %v620 = vsel %vm555, %v453, %v588
      %v621 = vsel %vm556, %v456, %v589
      %v622 = vsel %vm557, %v461, %v590
      %v623 = vsel %vm558, %v464, %v591
      %v624 = vsel %vm559, %v469, %v592
      %v625 = vsel %vm560, %v472, %v593
      %v626 = vsel %vm561, %v477, %v594
      %v627 = vsel %vm562, %v480, %v595
      %v628 = vsel %vm563, %v485, %v596
      %v629 = vsel %vm564, %v488, %v597
      %v630 = vsel %vm565, %v493, %v598
      %v631 = vsel %vm566, %v496, %v599
      %v632 = vsel %vm567, %v501, %v600
      %v633 = vsel %vm568, %v504, %v601
      %v634 = vsel %vm569, %v509, %v602
      %v635 = vsel %vm570, %v512, %v603
      %v636 = vsel %vm571, %v517, %v604
      %v637 = vsel %vm572, %v520, %v605
      %v638 = vsel %vm573, %v525, %v606
      %v639 = vsel %vm574, %v528, %v607
      %v640 = vsel %vm575, %v533, %v608
      %v641 = vsel %vm576, %v536, %v609
      %v642 = vsel %vm577, %v541, %v610
      %v643 = vsel %vm578, %v544, %v611
      %vm644 = vcmask 130048
      %645 = vst.msk [vmem:[%s254] sm:$0xff] %vm644, %v612
      %646 = vst.msk [vmem:[%s254 + $0x8] sm:$0xff] %vm644, %v613
      %647 = vst.msk [vmem:[%s254 + $0x10] sm:$0xff] %vm644, %v614
      %648 = vst.msk [vmem:[%s254 + $0x18] sm:$0xff] %vm644, %v615
      %649 = vst.msk [vmem:[%s254 + $0x20] sm:$0xff] %vm644, %v616
      %650 = vst.msk [vmem:[%s254 + $0x28] sm:$0xff] %vm644, %v617
      %651 = vst.msk [vmem:[%s254 + $0x30] sm:$0xff] %vm644, %v618
      %652 = vst.msk [vmem:[%s254 + $0x38] sm:$0xff] %vm644, %v619
      %653 = vst.msk [vmem:[%s254 + $0x40] sm:$0xff] %vm644, %v620
      %654 = vst.msk [vmem:[%s254 + $0x48] sm:$0xff] %vm644, %v621
      %655 = vst.msk [vmem:[%s254 + $0x50] sm:$0xff] %vm644, %v622
      %656 = vst.msk [vmem:[%s254 + $0x58] sm:$0xff] %vm644, %v623
      %657 = vst.msk [vmem:[%s254 + $0x60] sm:$0xff] %vm644, %v624
      %658 = vst.msk [vmem:[%s254 + $0x68] sm:$0xff] %vm644, %v625
      %659 = vst.msk [vmem:[%s254 + $0x70] sm:$0xff] %vm644, %v626
      %660 = vst.msk [vmem:[%s254 + $0x78] sm:$0xff] %vm644, %v627
      %661 = vst.msk [vmem:[%s254 + $0x80] sm:$0xff] %vm644, %v628
      %662 = vst.msk [vmem:[%s254 + $0x88] sm:$0xff] %vm644, %v629
      %663 = vst.msk [vmem:[%s254 + $0x90] sm:$0xff] %vm644, %v630
      %664 = vst.msk [vmem:[%s254 + $0x98] sm:$0xff] %vm644, %v631
      %665 = vst.msk [vmem:[%s254 + $0xa0] sm:$0xff] %vm644, %v632
      %666 = vst.msk [vmem:[%s254 + $0xa8] sm:$0xff] %vm644, %v633
      %667 = vst.msk [vmem:[%s254 + $0xb0] sm:$0xff] %vm644, %v634
      %668 = vst.msk [vmem:[%s254 + $0xb8] sm:$0xff] %vm644, %v635
      %669 = vst.msk [vmem:[%s254 + $0xc0] sm:$0xff] %vm644, %v636
      %670 = vst.msk [vmem:[%s254 + $0xc8] sm:$0xff] %vm644, %v637
      %671 = vst.msk [vmem:[%s254 + $0xd0] sm:$0xff] %vm644, %v638
      %672 = vst.msk [vmem:[%s254 + $0xd8] sm:$0xff] %vm644, %v639
      %673 = vst.msk [vmem:[%s254 + $0xe0] sm:$0xff] %vm644, %v640
      %674 = vst.msk [vmem:[%s254 + $0xe8] sm:$0xff] %vm644, %v641
      %675 = vst.msk [vmem:[%s254 + $0xf0] sm:$0xff] %vm644, %v642
      %676 = vst.msk [vmem:[%s254 + $0xf8] sm:$0xff] %vm644, %v643
      %v677 = vpack.c.bf16 %v613, %v612
      %v678 = vpack.c.bf16 %v615, %v614
      %v679 = vpack.c.bf16 %v617, %v616
      %v680 = vpack.c.bf16 %v619, %v618
      %v681 = vpack.c.bf16 %v621, %v620
      %v682 = vpack.c.bf16 %v623, %v622
      %v683 = vpack.c.bf16 %v625, %v624
      %v684 = vpack.c.bf16 %v627, %v626
      %v685 = vpack.c.bf16 %v629, %v628
      %v686 = vpack.c.bf16 %v631, %v630
      %v687 = vpack.c.bf16 %v633, %v632
      %v688 = vpack.c.bf16 %v635, %v634
      %v689 = vpack.c.bf16 %v637, %v636
      %v690 = vpack.c.bf16 %v639, %v638
      %v691 = vpack.c.bf16 %v641, %v640
      %v692 = vpack.c.bf16 %v643, %v642
      %v693 = vld [vmem:[%s2] sm:$0xf]
      %v694 = vld [vmem:[%s2 + $0x4] sm:$0xf]
      %v695 = vld [vmem:[%s4] sm:$0x1]
      %v697 = vlaneseq
      %v698 = vshrl.u32 %v697, 7
      %v699 = vsub.s32 0, %v698
      %v700 = vrot.slane %v695, %v699
      %717 = vrot.lane.b32.xlu0 %v677, 112
      %v718 = vpop.permute.xlu0 %717
      %719 = vrot.lane.b32.xlu0 %v678, 112
      %v720 = vpop.permute.xlu0 %719
      %721 = vrot.lane.b32.xlu0 %v679, 112
      %v722 = vpop.permute.xlu0 %721
      %723 = vrot.lane.b32.xlu0 %v680, 112
      %v724 = vpop.permute.xlu0 %723
      %725 = vrot.lane.b32.xlu0 %v681, 112
      %v726 = vpop.permute.xlu0 %725
      %727 = vrot.lane.b32.xlu0 %v682, 112
      %v728 = vpop.permute.xlu0 %727
      %729 = vrot.lane.b32.xlu0 %v683, 112
      %v730 = vpop.permute.xlu0 %729
      %731 = vrot.lane.b32.xlu0 %v684, 112
      %v732 = vpop.permute.xlu0 %731
      %733 = vrot.lane.b32.xlu0 %v685, 112
      %v734 = vpop.permute.xlu0 %733
      %735 = vrot.lane.b32.xlu0 %v686, 112
      %v736 = vpop.permute.xlu0 %735
      %737 = vrot.lane.b32.xlu0 %v687, 112
      %v738 = vpop.permute.xlu0 %737
      %739 = vrot.lane.b32.xlu0 %v688, 112
      %v740 = vpop.permute.xlu0 %739
      %741 = vrot.lane.b32.xlu0 %v689, 112
      %v742 = vpop.permute.xlu0 %741
      %743 = vrot.lane.b32.xlu0 %v690, 112
      %v744 = vpop.permute.xlu0 %743
      %745 = vrot.lane.b32.xlu0 %v691, 112
      %v746 = vpop.permute.xlu0 %745
      %747 = vrot.lane.b32.xlu0 %v692, 112
      %v748 = vpop.permute.xlu0 %747
      %v751 = vunpack.c.l.b16 %v693
      %v752 = vunpack.c.l.b16 %v694
      %v753 = vpack.c.b16 %v752, %v751
      %755 = vrot.lane.b32.xlu0 %v700, 96
      %v756 = vpop.permute.xlu0 %755
      %v759 = vsel %vm644, %v718, 0
      %v762 = vsel %vm644, %v720, 0
      %v765 = vsel %vm644, %v722, 0
      %v768 = vsel %vm644, %v724, 0
      %v771 = vsel %vm644, %v726, 0
      %v774 = vsel %vm644, %v728, 0
      %v777 = vsel %vm644, %v730, 0
      %v780 = vsel %vm644, %v732, 0
      %v783 = vsel %vm644, %v734, 0
      %v786 = vsel %vm644, %v736, 0
      %v789 = vsel %vm644, %v738, 0
      %v792 = vsel %vm644, %v740, 0
      %v795 = vsel %vm644, %v742, 0
      %v798 = vsel %vm644, %v744, 0
      %v801 = vsel %vm644, %v746, 0
      %v804 = vsel %vm644, %v748, 0
      %806 = vmatprep.subr.bf16.mxu0 0
      %807 = vmatpush1.bf16.msra.mxu0 0
      %808 = vmatprep.subr.bf16.mxu0 0
      %809 = vmatpush1.bf16.msra.mxu0 0
      %810 = vmatprep.subr.bf16.mxu0 0
      %811 = vmatpush1.bf16.msra.mxu0 0
      %812 = vmatprep.subr.bf16.mxu0 0
      %813 = vmatpush1.bf16.msra.mxu0 0
      %814 = vmatprep.subr.bf16.mxu0 0
      %815 = vmatpush1.bf16.msra.mxu0 0
      %816 = vmatprep.subr.bf16.mxu0 0
      %817 = vmatpush1.bf16.msra.mxu0 0
      %818 = vmatprep.subr.bf16.mxu0 0
      %819 = vmatpush1.bf16.msra.mxu0 0
      %820 = vmatprep.subr.bf16.mxu0 0
      %821 = vmatpush1.bf16.msra.mxu0 %v753
      %822 = vmatprep.subr.bf16.mxu0 0
      %823 = vmatpush2.bf16.msra.mxu0 0
      %824 = vmatprep.subr.bf16.mxu0 0
      %825 = vmatpush2.bf16.msra.mxu0 0
      %826 = vmatprep.subr.bf16.mxu0 0
      %827 = vmatpush2.bf16.msra.mxu0 0
      %828 = vmatprep.subr.bf16.mxu0 0
      %829 = vmatpush2.bf16.msra.mxu0 0
      %830 = vmatprep.subr.bf16.mxu0 0
      %831 = vmatpush2.bf16.msra.mxu0 0
      %832 = vmatprep.subr.bf16.mxu0 0
      %833 = vmatpush2.bf16.msra.mxu0 0
      %834 = vmatprep.subr.bf16.mxu0 0
      %835 = vmatpush2.bf16.msra.mxu0 0
      %836 = vmatprep.subr.bf16.mxu0 0
      %837 = vmatpush2.bf16.msra.mxu0 0
      %838 = vmatprep.mubr.bf16.mxu0 0
      %839 = vmatmul.mubr.bf16.gmra.mxu0 %v759
      %v840 = vpop.f32.mrf.mxu0
      %v841 = vadd.f32 %v756, %v840
      %v842 = vpop.f32.mrf.mxu0
      %v843 = vpop.f32.mrf.mxu0
      %v844 = vadd.f32 %v756, %v843
      %v845 = vpop.f32.mrf.mxu0
      %846 = vmatprep.mubr.bf16.mxu0 0
      %847 = vmatmul.mubr.bf16.gmra.mxu0 %v762
      %v848 = vpop.f32.mrf.mxu0
      %v849 = vadd.f32 %v756, %v848
      %v850 = vpop.f32.mrf.mxu0
      %v851 = vpop.f32.mrf.mxu0
      %v852 = vadd.f32 %v756, %v851
      %v853 = vpop.f32.mrf.mxu0
      %854 = vmatprep.mubr.bf16.mxu0 0
      %855 = vmatmul.mubr.bf16.gmra.mxu0 %v765
      %v856 = vpop.f32.mrf.mxu0
      %v857 = vadd.f32 %v756, %v856
      %v858 = vpop.f32.mrf.mxu0
      %v859 = vpop.f32.mrf.mxu0
      %v860 = vadd.f32 %v756, %v859
      %v861 = vpop.f32.mrf.mxu0
      %862 = vmatprep.mubr.bf16.mxu0 0
      %863 = vmatmul.mubr.bf16.gmra.mxu0 %v768
      %v864 = vpop.f32.mrf.mxu0
      %v865 = vadd.f32 %v756, %v864
      %v866 = vpop.f32.mrf.mxu0
      %v867 = vpop.f32.mrf.mxu0
      %v868 = vadd.f32 %v756, %v867
      %v869 = vpop.f32.mrf.mxu0
      %870 = vmatprep.mubr.bf16.mxu0 0
      %871 = vmatmul.mubr.bf16.gmra.mxu0 %v771
      %v872 = vpop.f32.mrf.mxu0
      %v873 = vadd.f32 %v756, %v872
      %v874 = vpop.f32.mrf.mxu0
      %v875 = vpop.f32.mrf.mxu0
      %v876 = vadd.f32 %v756, %v875
      %v877 = vpop.f32.mrf.mxu0
      %878 = vmatprep.mubr.bf16.mxu0 0
      %879 = vmatmul.mubr.bf16.gmra.mxu0 %v774
      %v880 = vpop.f32.mrf.mxu0
      %v881 = vadd.f32 %v756, %v880
      %v882 = vpop.f32.mrf.mxu0
      %v883 = vpop.f32.mrf.mxu0
      %v884 = vadd.f32 %v756, %v883
      %v885 = vpop.f32.mrf.mxu0
      %886 = vmatprep.mubr.bf16.mxu0 0
      %887 = vmatmul.mubr.bf16.gmra.mxu0 %v777
      %v888 = vpop.f32.mrf.mxu0
      %v889 = vadd.f32 %v756, %v888
      %v890 = vpop.f32.mrf.mxu0
      %v891 = vpop.f32.mrf.mxu0
      %v892 = vadd.f32 %v756, %v891
      %v893 = vpop.f32.mrf.mxu0
      %894 = vmatprep.mubr.bf16.mxu0 0
      %895 = vmatmul.mubr.bf16.gmra.mxu0 %v780
      %v896 = vpop.f32.mrf.mxu0
      %v897 = vadd.f32 %v756, %v896
      %v898 = vpop.f32.mrf.mxu0
      %v899 = vpop.f32.mrf.mxu0
      %v900 = vadd.f32 %v756, %v899
      %v901 = vpop.f32.mrf.mxu0
      %902 = vmatprep.mubr.bf16.mxu0 0
      %903 = vmatmul.mubr.bf16.gmra.mxu0 %v783
      %v904 = vpop.f32.mrf.mxu0
      %v905 = vadd.f32 %v756, %v904
      %v906 = vpop.f32.mrf.mxu0
      %v907 = vpop.f32.mrf.mxu0
      %v908 = vadd.f32 %v756, %v907
      %v909 = vpop.f32.mrf.mxu0
      %910 = vmatprep.mubr.bf16.mxu0 0
      %911 = vmatmul.mubr.bf16.gmra.mxu0 %v786
      %v912 = vpop.f32.mrf.mxu0
      %v913 = vadd.f32 %v756, %v912
      %v914 = vpop.f32.mrf.mxu0
      %v915 = vpop.f32.mrf.mxu0
      %v916 = vadd.f32 %v756, %v915
      %v917 = vpop.f32.mrf.mxu0
      %918 = vmatprep.mubr.bf16.mxu0 0
      %919 = vmatmul.mubr.bf16.gmra.mxu0 %v789
      %v920 = vpop.f32.mrf.mxu0
      %v921 = vadd.f32 %v756, %v920
      %v922 = vpop.f32.mrf.mxu0
      %v923 = vpop.f32.mrf.mxu0
      %v924 = vadd.f32 %v756, %v923
      %v925 = vpop.f32.mrf.mxu0
      %926 = vmatprep.mubr.bf16.mxu0 0
      %927 = vmatmul.mubr.bf16.gmra.mxu0 %v792
      %v928 = vpop.f32.mrf.mxu0
      %v929 = vadd.f32 %v756, %v928
      %v930 = vpop.f32.mrf.mxu0
      %v931 = vpop.f32.mrf.mxu0
      %v932 = vadd.f32 %v756, %v931
      %v933 = vpop.f32.mrf.mxu0
      %934 = vmatprep.mubr.bf16.mxu0 0
      %935 = vmatmul.mubr.bf16.gmra.mxu0 %v795
      %v936 = vpop.f32.mrf.mxu0
      %v937 = vadd.f32 %v756, %v936
      %v938 = vpop.f32.mrf.mxu0
      %v939 = vpop.f32.mrf.mxu0
      %v940 = vadd.f32 %v756, %v939
      %v941 = vpop.f32.mrf.mxu0
      %942 = vmatprep.mubr.bf16.mxu0 0
      %943 = vmatmul.mubr.bf16.gmra.mxu0 %v798
      %v944 = vpop.f32.mrf.mxu0
      %v945 = vadd.f32 %v756, %v944
      %v946 = vpop.f32.mrf.mxu0
      %v947 = vpop.f32.mrf.mxu0
      %v948 = vadd.f32 %v756, %v947
      %v949 = vpop.f32.mrf.mxu0
      %950 = vmatprep.mubr.bf16.mxu0 0
      %951 = vmatmul.mubr.bf16.gmra.mxu0 %v801
      %v952 = vpop.f32.mrf.mxu0
      %v953 = vadd.f32 %v756, %v952
      %v954 = vpop.f32.mrf.mxu0
      %v955 = vpop.f32.mrf.mxu0
      %v956 = vadd.f32 %v756, %v955
      %v957 = vpop.f32.mrf.mxu0
      %958 = vmatprep.mubr.bf16.mxu0 0
      %959 = vmatmul.mubr.bf16.gmra.mxu0 %v804
      %v960 = vpop.f32.mrf.mxu0
      %v961 = vadd.f32 %v756, %v960
      %v962 = vpop.f32.mrf.mxu0
      %v963 = vpop.f32.mrf.mxu0
      %v964 = vadd.f32 %v756, %v963
      %v965 = vpop.f32.mrf.mxu0
      %966 = vdwg.mxu0
      %vm967 = vcmp.gt.f32.partialorder %v841, 0.0
      %vm968 = vcmp.gt.f32.partialorder %v844, 0.0
      %vm969 = vcmp.gt.f32.partialorder %v849, 0.0
      %vm970 = vcmp.gt.f32.partialorder %v852, 0.0
      %vm971 = vcmp.gt.f32.partialorder %v857, 0.0
      %vm972 = vcmp.gt.f32.partialorder %v860, 0.0
      %vm973 = vcmp.gt.f32.partialorder %v865, 0.0
      %vm974 = vcmp.gt.f32.partialorder %v868, 0.0
      %vm975 = vcmp.gt.f32.partialorder %v873, 0.0
      %vm976 = vcmp.gt.f32.partialorder %v876, 0.0
      %vm977 = vcmp.gt.f32.partialorder %v881, 0.0
      %vm978 = vcmp.gt.f32.partialorder %v884, 0.0
      %vm979 = vcmp.gt.f32.partialorder %v889, 0.0
      %vm980 = vcmp.gt.f32.partialorder %v892, 0.0
      %vm981 = vcmp.gt.f32.partialorder %v897, 0.0
      %vm982 = vcmp.gt.f32.partialorder %v900, 0.0
      %vm983 = vcmp.gt.f32.partialorder %v905, 0.0
      %vm984 = vcmp.gt.f32.partialorder %v908, 0.0
      %vm985 = vcmp.gt.f32.partialorder %v913, 0.0
      %vm986 = vcmp.gt.f32.partialorder %v916, 0.0
      %vm987 = vcmp.gt.f32.partialorder %v921, 0.0
      %vm988 = vcmp.gt.f32.partialorder %v924, 0.0
      %vm989 = vcmp.gt.f32.partialorder %v929, 0.0
      %vm990 = vcmp.gt.f32.partialorder %v932, 0.0
      %vm991 = vcmp.gt.f32.partialorder %v937, 0.0
      %vm992 = vcmp.gt.f32.partialorder %v940, 0.0
      %vm993 = vcmp.gt.f32.partialorder %v945, 0.0
      %vm994 = vcmp.gt.f32.partialorder %v948, 0.0
      %vm995 = vcmp.gt.f32.partialorder %v953, 0.0
      %vm996 = vcmp.gt.f32.partialorder %v956, 0.0
      %vm997 = vcmp.gt.f32.partialorder %v961, 0.0
      %vm998 = vcmp.gt.f32.partialorder %v964, 0.0
      %v999 = vmul.f32 %v579, %v841
      %v1000 = vmul.f32 %v579, %v844
      %v1001 = vmul.f32 %v579, %v849
      %v1002 = vmul.f32 %v579, %v852
      %v1003 = vmul.f32 %v579, %v857
      %v1004 = vmul.f32 %v579, %v860
      %v1005 = vmul.f32 %v579, %v865
      %v1006 = vmul.f32 %v579, %v868
      %v1007 = vmul.f32 %v579, %v873
      %v1008 = vmul.f32 %v579, %v876
      %v1009 = vmul.f32 %v579, %v881
      %v1010 = vmul.f32 %v579, %v884
      %v1011 = vmul.f32 %v579, %v889
      %v1012 = vmul.f32 %v579, %v892
      %v1013 = vmul.f32 %v579, %v897
      %v1014 = vmul.f32 %v579, %v900
      %v1015 = vmul.f32 %v579, %v905
      %v1016 = vmul.f32 %v579, %v908
      %v1017 = vmul.f32 %v579, %v913
      %v1018 = vmul.f32 %v579, %v916
      %v1019 = vmul.f32 %v579, %v921
      %v1020 = vmul.f32 %v579, %v924
      %v1021 = vmul.f32 %v579, %v929
      %v1022 = vmul.f32 %v579, %v932
      %v1023 = vmul.f32 %v579, %v937
      %v1024 = vmul.f32 %v579, %v940
      %v1025 = vmul.f32 %v579, %v945
      %v1026 = vmul.f32 %v579, %v948
      %v1027 = vmul.f32 %v579, %v953
      %v1028 = vmul.f32 %v579, %v956
      %v1029 = vmul.f32 %v579, %v961
      %v1030 = vmul.f32 %v579, %v964
      %v1031 = vsel %vm967, %v841, %v999
      %v1032 = vsel %vm968, %v844, %v1000
      %v1033 = vsel %vm969, %v849, %v1001
      %v1034 = vsel %vm970, %v852, %v1002
      %v1035 = vsel %vm971, %v857, %v1003
      %v1036 = vsel %vm972, %v860, %v1004
      %v1037 = vsel %vm973, %v865, %v1005
      %v1038 = vsel %vm974, %v868, %v1006
      %v1039 = vsel %vm975, %v873, %v1007
      %v1040 = vsel %vm976, %v876, %v1008
      %v1041 = vsel %vm977, %v881, %v1009
      %v1042 = vsel %vm978, %v884, %v1010
      %v1043 = vsel %vm979, %v889, %v1011
      %v1044 = vsel %vm980, %v892, %v1012
      %v1045 = vsel %vm981, %v897, %v1013
      %v1046 = vsel %vm982, %v900, %v1014
      %v1047 = vsel %vm983, %v905, %v1015
      %v1048 = vsel %vm984, %v908, %v1016
      %v1049 = vsel %vm985, %v913, %v1017
      %v1050 = vsel %vm986, %v916, %v1018
      %v1051 = vsel %vm987, %v921, %v1019
      %v1052 = vsel %vm988, %v924, %v1020
      %v1053 = vsel %vm989, %v929, %v1021
      %v1054 = vsel %vm990, %v932, %v1022
      %v1055 = vsel %vm991, %v937, %v1023
      %v1056 = vsel %vm992, %v940, %v1024
      %v1057 = vsel %vm993, %v945, %v1025
      %v1058 = vsel %vm994, %v948, %v1026
      %v1059 = vsel %vm995, %v953, %v1027
      %v1060 = vsel %vm996, %v956, %v1028
      %v1061 = vsel %vm997, %v961, %v1029
      %v1062 = vsel %vm998, %v964, %v1030
      %1095 = vrot.lane.b32.xlu0 %v1031, 16
      %v1096 = vpop.permute.xlu0 %1095
      %1097 = vrot.lane.b32.xlu0 %v1032, 16
      %v1098 = vpop.permute.xlu0 %1097
      %1099 = vrot.lane.b32.xlu0 %v1033, 16
      %v1100 = vpop.permute.xlu0 %1099
      %1101 = vrot.lane.b32.xlu0 %v1034, 16
      %v1102 = vpop.permute.xlu0 %1101
      %1103 = vrot.lane.b32.xlu0 %v1035, 16
      %v1104 = vpop.permute.xlu0 %1103
      %1105 = vrot.lane.b32.xlu0 %v1036, 16
      %v1106 = vpop.permute.xlu0 %1105
      %1107 = vrot.lane.b32.xlu0 %v1037, 16
      %v1108 = vpop.permute.xlu0 %1107
      %1109 = vrot.lane.b32.xlu0 %v1038, 16
      %v1110 = vpop.permute.xlu0 %1109
      %1111 = vrot.lane.b32.xlu0 %v1039, 16
      %v1112 = vpop.permute.xlu0 %1111
      %1113 = vrot.lane.b32.xlu0 %v1040, 16
      %v1114 = vpop.permute.xlu0 %1113
      %1115 = vrot.lane.b32.xlu0 %v1041, 16
      %v1116 = vpop.permute.xlu0 %1115
      %1117 = vrot.lane.b32.xlu0 %v1042, 16
      %v1118 = vpop.permute.xlu0 %1117
      %1119 = vrot.lane.b32.xlu0 %v1043, 16
      %v1120 = vpop.permute.xlu0 %1119
      %1121 = vrot.lane.b32.xlu0 %v1044, 16
      %v1122 = vpop.permute.xlu0 %1121
      %1123 = vrot.lane.b32.xlu0 %v1045, 16
      %v1124 = vpop.permute.xlu0 %1123
      %1125 = vrot.lane.b32.xlu0 %v1046, 16
      %v1126 = vpop.permute.xlu0 %1125
      %1127 = vrot.lane.b32.xlu0 %v1047, 16
      %v1128 = vpop.permute.xlu0 %1127
      %1129 = vrot.lane.b32.xlu0 %v1048, 16
      %v1130 = vpop.permute.xlu0 %1129
      %1131 = vrot.lane.b32.xlu0 %v1049, 16
      %v1132 = vpop.permute.xlu0 %1131
      %1133 = vrot.lane.b32.xlu0 %v1050, 16
      %v1134 = vpop.permute.xlu0 %1133
      %1135 = vrot.lane.b32.xlu0 %v1051, 16
      %v1136 = vpop.permute.xlu0 %1135
      %1137 = vrot.lane.b32.xlu0 %v1052, 16
      %v1138 = vpop.permute.xlu0 %1137
      %1139 = vrot.lane.b32.xlu0 %v1053, 16
      %v1140 = vpop.permute.xlu0 %1139
      %1141 = vrot.lane.b32.xlu0 %v1054, 16
      %v1142 = vpop.permute.xlu0 %1141
      %1143 = vrot.lane.b32.xlu0 %v1055, 16
      %v1144 = vpop.permute.xlu0 %1143
      %1145 = vrot.lane.b32.xlu0 %v1056, 16
      %v1146 = vpop.permute.xlu0 %1145
      %1147 = vrot.lane.b32.xlu0 %v1057, 16
      %v1148 = vpop.permute.xlu0 %1147
      %1149 = vrot.lane.b32.xlu0 %v1058, 16
      %v1150 = vpop.permute.xlu0 %1149
      %1151 = vrot.lane.b32.xlu0 %v1059, 16
      %v1152 = vpop.permute.xlu0 %1151
      %1153 = vrot.lane.b32.xlu0 %v1060, 16
      %v1154 = vpop.permute.xlu0 %1153
      %1155 = vrot.lane.b32.xlu0 %v1061, 16
      %v1156 = vpop.permute.xlu0 %1155
      %1157 = vrot.lane.b32.xlu0 %v1062, 16
      %v1158 = vpop.permute.xlu0 %1157
      %vm1191 = vcmask 195712
      %1192 = vst.msk [vmem:[%s254] sm:$0xff] %vm1191, %v1096
      %1193 = vst.msk [vmem:[%s254 + $0x8] sm:$0xff] %vm1191, %v1098
      %1194 = vst.msk [vmem:[%s254 + $0x10] sm:$0xff] %vm1191, %v1100
      %1195 = vst.msk [vmem:[%s254 + $0x18] sm:$0xff] %vm1191, %v1102
      %1196 = vst.msk [vmem:[%s254 + $0x20] sm:$0xff] %vm1191, %v1104
      %1197 = vst.msk [vmem:[%s254 + $0x28] sm:$0xff] %vm1191, %v1106
      %1198 = vst.msk [vmem:[%s254 + $0x30] sm:$0xff] %vm1191, %v1108
      %1199 = vst.msk [vmem:[%s254 + $0x38] sm:$0xff] %vm1191, %v1110
      %1200 = vst.msk [vmem:[%s254 + $0x40] sm:$0xff] %vm1191, %v1112
      %1201 = vst.msk [vmem:[%s254 + $0x48] sm:$0xff] %vm1191, %v1114
      %1202 = vst.msk [vmem:[%s254 + $0x50] sm:$0xff] %vm1191, %v1116
      %1203 = vst.msk [vmem:[%s254 + $0x58] sm:$0xff] %vm1191, %v1118
      %1204 = vst.msk [vmem:[%s254 + $0x60] sm:$0xff] %vm1191, %v1120
      %1205 = vst.msk [vmem:[%s254 + $0x68] sm:$0xff] %vm1191, %v1122
      %1206 = vst.msk [vmem:[%s254 + $0x70] sm:$0xff] %vm1191, %v1124
      %1207 = vst.msk [vmem:[%s254 + $0x78] sm:$0xff] %vm1191, %v1126
      %1208 = vst.msk [vmem:[%s254 + $0x80] sm:$0xff] %vm1191, %v1128
      %1209 = vst.msk [vmem:[%s254 + $0x88] sm:$0xff] %vm1191, %v1130
      %1210 = vst.msk [vmem:[%s254 + $0x90] sm:$0xff] %vm1191, %v1132
      %1211 = vst.msk [vmem:[%s254 + $0x98] sm:$0xff] %vm1191, %v1134
      %1212 = vst.msk [vmem:[%s254 + $0xa0] sm:$0xff] %vm1191, %v1136
      %1213 = vst.msk [vmem:[%s254 + $0xa8] sm:$0xff] %vm1191, %v1138
      %1214 = vst.msk [vmem:[%s254 + $0xb0] sm:$0xff] %vm1191, %v1140
      %1215 = vst.msk [vmem:[%s254 + $0xb8] sm:$0xff] %vm1191, %v1142
      %1216 = vst.msk [vmem:[%s254 + $0xc0] sm:$0xff] %vm1191, %v1144
      %1217 = vst.msk [vmem:[%s254 + $0xc8] sm:$0xff] %vm1191, %v1146
      %1218 = vst.msk [vmem:[%s254 + $0xd0] sm:$0xff] %vm1191, %v1148
      %1219 = vst.msk [vmem:[%s254 + $0xd8] sm:$0xff] %vm1191, %v1150
      %1220 = vst.msk [vmem:[%s254 + $0xe0] sm:$0xff] %vm1191, %v1152
      %1221 = vst.msk [vmem:[%s254 + $0xe8] sm:$0xff] %vm1191, %v1154
      %1222 = vst.msk [vmem:[%s254 + $0xf0] sm:$0xff] %vm1191, %v1156
      %1223 = vst.msk [vmem:[%s254 + $0xf8] sm:$0xff] %vm1191, %v1158
      %v1224 = vpack.c.bf16 %v1032, %v1031
      %v1225 = vpack.c.bf16 %v1034, %v1033
      %v1226 = vpack.c.bf16 %v1036, %v1035
      %v1227 = vpack.c.bf16 %v1038, %v1037
      %v1228 = vpack.c.bf16 %v1040, %v1039
      %v1229 = vpack.c.bf16 %v1042, %v1041
      %v1230 = vpack.c.bf16 %v1044, %v1043
      %v1231 = vpack.c.bf16 %v1046, %v1045
      %v1232 = vpack.c.bf16 %v1048, %v1047
      %v1233 = vpack.c.bf16 %v1050, %v1049
      %v1234 = vpack.c.bf16 %v1052, %v1051
      %v1235 = vpack.c.bf16 %v1054, %v1053
      %v1236 = vpack.c.bf16 %v1056, %v1055
      %v1237 = vpack.c.bf16 %v1058, %v1057
      %v1238 = vpack.c.bf16 %v1060, %v1059
      %v1239 = vpack.c.bf16 %v1062, %v1061
      %v1240 = vld [vmem:[%s3] sm:$0xf]
      %v1241 = vld [vmem:[%s4] sm:$0x1]
      %v1243 = vlaneseq
      %v1244 = vshrl.u32 %v1243, 7
      %v1245 = vsub.s32 0, %v1244
      %v1246 = vrot.slane %v1241, %v1245
      %1263 = vrot.lane.b32.xlu0 %v1224, 120
      %v1264 = vpop.permute.xlu0 %1263
      %1265 = vrot.lane.b32.xlu0 %v1225, 120
      %v1266 = vpop.permute.xlu0 %1265
      %1267 = vrot.lane.b32.xlu0 %v1226, 120
      %v1268 = vpop.permute.xlu0 %1267
      %1269 = vrot.lane.b32.xlu0 %v1227, 120
      %v1270 = vpop.permute.xlu0 %1269
      %1271 = vrot.lane.b32.xlu0 %v1228, 120
      %v1272 = vpop.permute.xlu0 %1271
      %1273 = vrot.lane.b32.xlu0 %v1229, 120
      %v1274 = vpop.permute.xlu0 %1273
      %1275 = vrot.lane.b32.xlu0 %v1230, 120
      %v1276 = vpop.permute.xlu0 %1275
      %1277 = vrot.lane.b32.xlu0 %v1231, 120
      %v1278 = vpop.permute.xlu0 %1277
      %1279 = vrot.lane.b32.xlu0 %v1232, 120
      %v1280 = vpop.permute.xlu0 %1279
      %1281 = vrot.lane.b32.xlu0 %v1233, 120
      %v1282 = vpop.permute.xlu0 %1281
      %1283 = vrot.lane.b32.xlu0 %v1234, 120
      %v1284 = vpop.permute.xlu0 %1283
      %1285 = vrot.lane.b32.xlu0 %v1235, 120
      %v1286 = vpop.permute.xlu0 %1285
      %1287 = vrot.lane.b32.xlu0 %v1236, 120
      %v1288 = vpop.permute.xlu0 %1287
      %1289 = vrot.lane.b32.xlu0 %v1237, 120
      %v1290 = vpop.permute.xlu0 %1289
      %1291 = vrot.lane.b32.xlu0 %v1238, 120
      %v1292 = vpop.permute.xlu0 %1291
      %1293 = vrot.lane.b32.xlu0 %v1239, 120
      %v1294 = vpop.permute.xlu0 %1293
      %1295 = vrot.lane.b32.xlu0 %v1246, 80
      %v1296 = vpop.permute.xlu0 %1295
      %vm1298 = vcmask 64512
      %v1300 = vsel %vm1298, %v1264, 0
      %v1303 = vsel %vm1298, %v1266, 0
      %v1306 = vsel %vm1298, %v1268, 0
      %v1309 = vsel %vm1298, %v1270, 0
      %v1312 = vsel %vm1298, %v1272, 0
      %v1315 = vsel %vm1298, %v1274, 0
      %v1318 = vsel %vm1298, %v1276, 0
      %v1321 = vsel %vm1298, %v1278, 0
      %v1324 = vsel %vm1298, %v1280, 0
      %v1327 = vsel %vm1298, %v1282, 0
      %v1330 = vsel %vm1298, %v1284, 0
      %v1333 = vsel %vm1298, %v1286, 0
      %v1336 = vsel %vm1298, %v1288, 0
      %v1339 = vsel %vm1298, %v1290, 0
      %v1342 = vsel %vm1298, %v1292, 0
      %v1345 = vsel %vm1298, %v1294, 0
      %vm1347 = vcmask 1043456
      %v1349 = vsel %vm1347, %v1240, 0
      %1351 = vmatprep.subr.bf16.mxu0 0
      %1352 = vmatpush1.bf16.msra.mxu0 0
      %1353 = vmatprep.subr.bf16.mxu0 0
      %1354 = vmatpush1.bf16.msra.mxu0 0
      %1355 = vmatprep.subr.bf16.mxu0 0
      %1356 = vmatpush1.bf16.msra.mxu0 0
      %1357 = vmatprep.subr.bf16.mxu0 0
      %1358 = vmatpush1.bf16.msra.mxu0 0
      %1359 = vmatprep.subr.bf16.mxu0 0
      %1360 = vmatpush1.bf16.msra.mxu0 0
      %1361 = vmatprep.subr.bf16.mxu0 0
      %1362 = vmatpush1.bf16.msra.mxu0 0
      %1363 = vmatprep.subr.bf16.mxu0 0
      %1364 = vmatpush1.bf16.msra.mxu0 0
      %1365 = vmatprep.subr.bf16.mxu0 0
      %1366 = vmatpush1.bf16.msra.mxu0 %v1349
      %1367 = vmatprep.subr.bf16.mxu0 0
      %1368 = vmatpush2.bf16.msra.mxu0 0
      %1369 = vmatprep.subr.bf16.mxu0 0
      %1370 = vmatpush2.bf16.msra.mxu0 0
      %1371 = vmatprep.subr.bf16.mxu0 0
      %1372 = vmatpush2.bf16.msra.mxu0 0
      %1373 = vmatprep.subr.bf16.mxu0 0
      %1374 = vmatpush2.bf16.msra.mxu0 0
      %1375 = vmatprep.subr.bf16.mxu0 0
      %1376 = vmatpush2.bf16.msra.mxu0 0
      %1377 = vmatprep.subr.bf16.mxu0 0
      %1378 = vmatpush2.bf16.msra.mxu0 0
      %1379 = vmatprep.subr.bf16.mxu0 0
      %1380 = vmatpush2.bf16.msra.mxu0 0
      %1381 = vmatprep.subr.bf16.mxu0 0
      %1382 = vmatpush2.bf16.msra.mxu0 0
      %1383 = vmatprep.mubr.bf16.mxu0 0
      %1384 = vmatmul.mubr.bf16.gmra.mxu0 %v1300
      %v1385 = vpop.f32.mrf.mxu0
      %v1386 = vadd.f32 %v1296, %v1385
      %v1387 = vpop.f32.mrf.mxu0
      %v1388 = vpop.f32.mrf.mxu0
      %v1389 = vadd.f32 %v1296, %v1388
      %v1390 = vpop.f32.mrf.mxu0
      %1391 = vmatprep.mubr.bf16.mxu0 0
      %1392 = vmatmul.mubr.bf16.gmra.mxu0 %v1303
      %v1393 = vpop.f32.mrf.mxu0
      %v1394 = vadd.f32 %v1296, %v1393
      %v1395 = vpop.f32.mrf.mxu0
      %v1396 = vpop.f32.mrf.mxu0
      %v1397 = vadd.f32 %v1296, %v1396
      %v1398 = vpop.f32.mrf.mxu0
      %1399 = vmatprep.mubr.bf16.mxu0 0
      %1400 = vmatmul.mubr.bf16.gmra.mxu0 %v1306
      %v1401 = vpop.f32.mrf.mxu0
      %v1402 = vadd.f32 %v1296, %v1401
      %v1403 = vpop.f32.mrf.mxu0
      %v1404 = vpop.f32.mrf.mxu0
      %v1405 = vadd.f32 %v1296, %v1404
      %v1406 = vpop.f32.mrf.mxu0
      %1407 = vmatprep.mubr.bf16.mxu0 0
      %1408 = vmatmul.mubr.bf16.gmra.mxu0 %v1309
      %v1409 = vpop.f32.mrf.mxu0
      %v1410 = vadd.f32 %v1296, %v1409
      %v1411 = vpop.f32.mrf.mxu0
      %v1412 = vpop.f32.mrf.mxu0
      %v1413 = vadd.f32 %v1296, %v1412
      %v1414 = vpop.f32.mrf.mxu0
      %1415 = vmatprep.mubr.bf16.mxu0 0
      %1416 = vmatmul.mubr.bf16.gmra.mxu0 %v1312
      %v1417 = vpop.f32.mrf.mxu0
      %v1418 = vadd.f32 %v1296, %v1417
      %v1419 = vpop.f32.mrf.mxu0
      %v1420 = vpop.f32.mrf.mxu0
      %v1421 = vadd.f32 %v1296, %v1420
      %v1422 = vpop.f32.mrf.mxu0
      %1423 = vmatprep.mubr.bf16.mxu0 0
      %1424 = vmatmul.mubr.bf16.gmra.mxu0 %v1315
      %v1425 = vpop.f32.mrf.mxu0
      %v1426 = vadd.f32 %v1296, %v1425
      %v1427 = vpop.f32.mrf.mxu0
      %v1428 = vpop.f32.mrf.mxu0
      %v1429 = vadd.f32 %v1296, %v1428
      %v1430 = vpop.f32.mrf.mxu0
      %1431 = vmatprep.mubr.bf16.mxu0 0
      %1432 = vmatmul.mubr.bf16.gmra.mxu0 %v1318
      %v1433 = vpop.f32.mrf.mxu0
      %v1434 = vadd.f32 %v1296, %v1433
      %v1435 = vpop.f32.mrf.mxu0
      %v1436 = vpop.f32.mrf.mxu0
      %v1437 = vadd.f32 %v1296, %v1436
      %v1438 = vpop.f32.mrf.mxu0
      %1439 = vmatprep.mubr.bf16.mxu0 0
      %1440 = vmatmul.mubr.bf16.gmra.mxu0 %v1321
      %v1441 = vpop.f32.mrf.mxu0
      %v1442 = vadd.f32 %v1296, %v1441
      %v1443 = vpop.f32.mrf.mxu0
      %v1444 = vpop.f32.mrf.mxu0
      %v1445 = vadd.f32 %v1296, %v1444
      %v1446 = vpop.f32.mrf.mxu0
      %1447 = vmatprep.mubr.bf16.mxu0 0
      %1448 = vmatmul.mubr.bf16.gmra.mxu0 %v1324
      %v1449 = vpop.f32.mrf.mxu0
      %v1450 = vadd.f32 %v1296, %v1449
      %v1451 = vpop.f32.mrf.mxu0
      %v1452 = vpop.f32.mrf.mxu0
      %v1453 = vadd.f32 %v1296, %v1452
      %v1454 = vpop.f32.mrf.mxu0
      %1455 = vmatprep.mubr.bf16.mxu0 0
      %1456 = vmatmul.mubr.bf16.gmra.mxu0 %v1327
      %v1457 = vpop.f32.mrf.mxu0
      %v1458 = vadd.f32 %v1296, %v1457
      %v1459 = vpop.f32.mrf.mxu0
      %v1460 = vpop.f32.mrf.mxu0
      %v1461 = vadd.f32 %v1296, %v1460
      %v1462 = vpop.f32.mrf.mxu0
      %1463 = vmatprep.mubr.bf16.mxu0 0
      %1464 = vmatmul.mubr.bf16.gmra.mxu0 %v1330
      %v1465 = vpop.f32.mrf.mxu0
      %v1466 = vadd.f32 %v1296, %v1465
      %v1467 = vpop.f32.mrf.mxu0
      %v1468 = vpop.f32.mrf.mxu0
      %v1469 = vadd.f32 %v1296, %v1468
      %v1470 = vpop.f32.mrf.mxu0
      %1471 = vmatprep.mubr.bf16.mxu0 0
      %1472 = vmatmul.mubr.bf16.gmra.mxu0 %v1333
      %v1473 = vpop.f32.mrf.mxu0
      %v1474 = vadd.f32 %v1296, %v1473
      %v1475 = vpop.f32.mrf.mxu0
      %v1476 = vpop.f32.mrf.mxu0
      %v1477 = vadd.f32 %v1296, %v1476
      %v1478 = vpop.f32.mrf.mxu0
      %1479 = vmatprep.mubr.bf16.mxu0 0
      %1480 = vmatmul.mubr.bf16.gmra.mxu0 %v1336
      %v1481 = vpop.f32.mrf.mxu0
      %v1482 = vadd.f32 %v1296, %v1481
      %v1483 = vpop.f32.mrf.mxu0
      %v1484 = vpop.f32.mrf.mxu0
      %v1485 = vadd.f32 %v1296, %v1484
      %v1486 = vpop.f32.mrf.mxu0
      %1487 = vmatprep.mubr.bf16.mxu0 0
      %1488 = vmatmul.mubr.bf16.gmra.mxu0 %v1339
      %v1489 = vpop.f32.mrf.mxu0
      %v1490 = vadd.f32 %v1296, %v1489
      %v1491 = vpop.f32.mrf.mxu0
      %v1492 = vpop.f32.mrf.mxu0
      %v1493 = vadd.f32 %v1296, %v1492
      %v1494 = vpop.f32.mrf.mxu0
      %1495 = vmatprep.mubr.bf16.mxu0 0
      %1496 = vmatmul.mubr.bf16.gmra.mxu0 %v1342
      %v1497 = vpop.f32.mrf.mxu0
      %v1498 = vadd.f32 %v1296, %v1497
      %v1499 = vpop.f32.mrf.mxu0
      %v1500 = vpop.f32.mrf.mxu0
      %v1501 = vadd.f32 %v1296, %v1500
      %v1502 = vpop.f32.mrf.mxu0
      %1503 = vmatprep.mubr.bf16.mxu0 0
      %1504 = vmatmul.mubr.bf16.gmra.mxu0 %v1345
      %v1505 = vpop.f32.mrf.mxu0
      %v1506 = vadd.f32 %v1296, %v1505
      %v1507 = vpop.f32.mrf.mxu0
      %v1508 = vpop.f32.mrf.mxu0
      %v1509 = vadd.f32 %v1296, %v1508
      %v1510 = vpop.f32.mrf.mxu0
      %1511 = vdwg.mxu0
      %vm1512 = vcmp.gt.f32.partialorder %v1386, 0.0
      %vm1513 = vcmp.gt.f32.partialorder %v1389, 0.0
      %vm1514 = vcmp.gt.f32.partialorder %v1394, 0.0
      %vm1515 = vcmp.gt.f32.partialorder %v1397, 0.0
      %vm1516 = vcmp.gt.f32.partialorder %v1402, 0.0
      %vm1517 = vcmp.gt.f32.partialorder %v1405, 0.0
      %vm1518 = vcmp.gt.f32.partialorder %v1410, 0.0
      %vm1519 = vcmp.gt.f32.partialorder %v1413, 0.0
      %vm1520 = vcmp.gt.f32.partialorder %v1418, 0.0
      %vm1521 = vcmp.gt.f32.partialorder %v1421, 0.0
      %vm1522 = vcmp.gt.f32.partialorder %v1426, 0.0
      %vm1523 = vcmp.gt.f32.partialorder %v1429, 0.0
      %vm1524 = vcmp.gt.f32.partialorder %v1434, 0.0
      %vm1525 = vcmp.gt.f32.partialorder %v1437, 0.0
      %vm1526 = vcmp.gt.f32.partialorder %v1442, 0.0
      %vm1527 = vcmp.gt.f32.partialorder %v1445, 0.0
      %vm1528 = vcmp.gt.f32.partialorder %v1450, 0.0
      %vm1529 = vcmp.gt.f32.partialorder %v1453, 0.0
      %vm1530 = vcmp.gt.f32.partialorder %v1458, 0.0
      %vm1531 = vcmp.gt.f32.partialorder %v1461, 0.0
      %vm1532 = vcmp.gt.f32.partialorder %v1466, 0.0
      %vm1533 = vcmp.gt.f32.partialorder %v1469, 0.0
      %vm1534 = vcmp.gt.f32.partialorder %v1474, 0.0
      %vm1535 = vcmp.gt.f32.partialorder %v1477, 0.0
      %vm1536 = vcmp.gt.f32.partialorder %v1482, 0.0
      %vm1537 = vcmp.gt.f32.partialorder %v1485, 0.0
      %vm1538 = vcmp.gt.f32.partialorder %v1490, 0.0
      %vm1539 = vcmp.gt.f32.partialorder %v1493, 0.0
      %vm1540 = vcmp.gt.f32.partialorder %v1498, 0.0
      %vm1541 = vcmp.gt.f32.partialorder %v1501, 0.0
      %vm1542 = vcmp.gt.f32.partialorder %v1506, 0.0
      %vm1543 = vcmp.gt.f32.partialorder %v1509, 0.0
      %v1544 = vmul.f32 %v579, %v1386
      %v1545 = vmul.f32 %v579, %v1389
      %v1546 = vmul.f32 %v579, %v1394
      %v1547 = vmul.f32 %v579, %v1397
      %v1548 = vmul.f32 %v579, %v1402
      %v1549 = vmul.f32 %v579, %v1405
      %v1550 = vmul.f32 %v579, %v1410
      %v1551 = vmul.f32 %v579, %v1413
      %v1552 = vmul.f32 %v579, %v1418
      %v1553 = vmul.f32 %v579, %v1421
      %v1554 = vmul.f32 %v579, %v1426
      %v1555 = vmul.f32 %v579, %v1429
      %v1556 = vmul.f32 %v579, %v1434
      %v1557 = vmul.f32 %v579, %v1437
      %v1558 = vmul.f32 %v579, %v1442
      %v1559 = vmul.f32 %v579, %v1445
      %v1560 = vmul.f32 %v579, %v1450
      %v1561 = vmul.f32 %v579, %v1453
      %v1562 = vmul.f32 %v579, %v1458
      %v1563 = vmul.f32 %v579, %v1461
      %v1564 = vmul.f32 %v579, %v1466
      %v1565 = vmul.f32 %v579, %v1469
      %v1566 = vmul.f32 %v579, %v1474
      %v1567 = vmul.f32 %v579, %v1477
      %v1568 = vmul.f32 %v579, %v1482
      %v1569 = vmul.f32 %v579, %v1485
      %v1570 = vmul.f32 %v579, %v1490
      %v1571 = vmul.f32 %v579, %v1493
      %v1572 = vmul.f32 %v579, %v1498
      %v1573 = vmul.f32 %v579, %v1501
      %v1574 = vmul.f32 %v579, %v1506
      %v1575 = vmul.f32 %v579, %v1509
      %v1576 = vsel %vm1512, %v1386, %v1544
      %v1577 = vsel %vm1513, %v1389, %v1545
      %v1578 = vsel %vm1514, %v1394, %v1546
      %v1579 = vsel %vm1515, %v1397, %v1547
      %v1580 = vsel %vm1516, %v1402, %v1548
      %v1581 = vsel %vm1517, %v1405, %v1549
      %v1582 = vsel %vm1518, %v1410, %v1550
      %v1583 = vsel %vm1519, %v1413, %v1551
      %v1584 = vsel %vm1520, %v1418, %v1552
      %v1585 = vsel %vm1521, %v1421, %v1553
      %v1586 = vsel %vm1522, %v1426, %v1554
      %v1587 = vsel %vm1523, %v1429, %v1555
      %v1588 = vsel %vm1524, %v1434, %v1556
      %v1589 = vsel %vm1525, %v1437, %v1557
      %v1590 = vsel %vm1526, %v1442, %v1558
      %v1591 = vsel %vm1527, %v1445, %v1559
      %v1592 = vsel %vm1528, %v1450, %v1560
      %v1593 = vsel %vm1529, %v1453, %v1561
      %v1594 = vsel %vm1530, %v1458, %v1562
      %v1595 = vsel %vm1531, %v1461, %v1563
      %v1596 = vsel %vm1532, %v1466, %v1564
      %v1597 = vsel %vm1533, %v1469, %v1565
      %v1598 = vsel %vm1534, %v1474, %v1566
      %v1599 = vsel %vm1535, %v1477, %v1567
      %v1600 = vsel %vm1536, %v1482, %v1568
      %v1601 = vsel %vm1537, %v1485, %v1569
      %v1602 = vsel %vm1538, %v1490, %v1570
      %v1603 = vsel %vm1539, %v1493, %v1571
      %v1604 = vsel %vm1540, %v1498, %v1572
      %v1605 = vsel %vm1541, %v1501, %v1573
      %v1606 = vsel %vm1542, %v1506, %v1574
      %v1607 = vsel %vm1543, %v1509, %v1575
      %1640 = vrot.lane.b32.xlu0 %v1576, 24
      %v1641 = vpop.permute.xlu0 %1640
      %1642 = vrot.lane.b32.xlu0 %v1577, 24
      %v1643 = vpop.permute.xlu0 %1642
      %1644 = vrot.lane.b32.xlu0 %v1578, 24
      %v1645 = vpop.permute.xlu0 %1644
      %1646 = vrot.lane.b32.xlu0 %v1579, 24
      %v1647 = vpop.permute.xlu0 %1646
      %1648 = vrot.lane.b32.xlu0 %v1580, 24
      %v1649 = vpop.permute.xlu0 %1648
      %1650 = vrot.lane.b32.xlu0 %v1581, 24
      %v1651 = vpop.permute.xlu0 %1650
      %1652 = vrot.lane.b32.xlu0 %v1582, 24
      %v1653 = vpop.permute.xlu0 %1652
      %1654 = vrot.lane.b32.xlu0 %v1583, 24
      %v1655 = vpop.permute.xlu0 %1654
      %1656 = vrot.lane.b32.xlu0 %v1584, 24
      %v1657 = vpop.permute.xlu0 %1656
      %1658 = vrot.lane.b32.xlu0 %v1585, 24
      %v1659 = vpop.permute.xlu0 %1658
      %1660 = vrot.lane.b32.xlu0 %v1586, 24
      %v1661 = vpop.permute.xlu0 %1660
      %1662 = vrot.lane.b32.xlu0 %v1587, 24
      %v1663 = vpop.permute.xlu0 %1662
      %1664 = vrot.lane.b32.xlu0 %v1588, 24
      %v1665 = vpop.permute.xlu0 %1664
      %1666 = vrot.lane.b32.xlu0 %v1589, 24
      %v1667 = vpop.permute.xlu0 %1666
      %1668 = vrot.lane.b32.xlu0 %v1590, 24
      %v1669 = vpop.permute.xlu0 %1668
      %1670 = vrot.lane.b32.xlu0 %v1591, 24
      %v1671 = vpop.permute.xlu0 %1670
      %1672 = vrot.lane.b32.xlu0 %v1592, 24
      %v1673 = vpop.permute.xlu0 %1672
      %1674 = vrot.lane.b32.xlu0 %v1593, 24
      %v1675 = vpop.permute.xlu0 %1674
      %1676 = vrot.lane.b32.xlu0 %v1594, 24
      %v1677 = vpop.permute.xlu0 %1676
      %1678 = vrot.lane.b32.xlu0 %v1595, 24
      %v1679 = vpop.permute.xlu0 %1678
      %1680 = vrot.lane.b32.xlu0 %v1596, 24
      %v1681 = vpop.permute.xlu0 %1680
      %1682 = vrot.lane.b32.xlu0 %v1597, 24
      %v1683 = vpop.permute.xlu0 %1682
      %1684 = vrot.lane.b32.xlu0 %v1598, 24
      %v1685 = vpop.permute.xlu0 %1684
      %1686 = vrot.lane.b32.xlu0 %v1599, 24
      %v1687 = vpop.permute.xlu0 %1686
      %1688 = vrot.lane.b32.xlu0 %v1600, 24
      %v1689 = vpop.permute.xlu0 %1688
      %1690 = vrot.lane.b32.xlu0 %v1601, 24
      %v1691 = vpop.permute.xlu0 %1690
      %1692 = vrot.lane.b32.xlu0 %v1602, 24
      %v1693 = vpop.permute.xlu0 %1692
      %1694 = vrot.lane.b32.xlu0 %v1603, 24
      %v1695 = vpop.permute.xlu0 %1694
      %1696 = vrot.lane.b32.xlu0 %v1604, 24
      %v1697 = vpop.permute.xlu0 %1696
      %1698 = vrot.lane.b32.xlu0 %v1605, 24
      %v1699 = vpop.permute.xlu0 %1698
      %1700 = vrot.lane.b32.xlu0 %v1606, 24
      %v1701 = vpop.permute.xlu0 %1700
      %1702 = vrot.lane.b32.xlu0 %v1607, 24
      %v1703 = vpop.permute.xlu0 %1702
      %vm1736 = vcmask 261312
      %1737 = vst.msk [vmem:[%s254] sm:$0xff] %vm1736, %v1641
      %1738 = vst.msk [vmem:[%s254 + $0x8] sm:$0xff] %vm1736, %v1643
      %1739 = vst.msk [vmem:[%s254 + $0x10] sm:$0xff] %vm1736, %v1645
      %1740 = vst.msk [vmem:[%s254 + $0x18] sm:$0xff] %vm1736, %v1647
      %1741 = vst.msk [vmem:[%s254 + $0x20] sm:$0xff] %vm1736, %v1649
      %1742 = vst.msk [vmem:[%s254 + $0x28] sm:$0xff] %vm1736, %v1651
      %1743 = vst.msk [vmem:[%s254 + $0x30] sm:$0xff] %vm1736, %v1653
      %1744 = vst.msk [vmem:[%s254 + $0x38] sm:$0xff] %vm1736, %v1655
      %1745 = vst.msk [vmem:[%s254 + $0x40] sm:$0xff] %vm1736, %v1657
      %1746 = vst.msk [vmem:[%s254 + $0x48] sm:$0xff] %vm1736, %v1659
      %1747 = vst.msk [vmem:[%s254 + $0x50] sm:$0xff] %vm1736, %v1661
      %1748 = vst.msk [vmem:[%s254 + $0x58] sm:$0xff] %vm1736, %v1663
      %1749 = vst.msk [vmem:[%s254 + $0x60] sm:$0xff] %vm1736, %v1665
      %1750 = vst.msk [vmem:[%s254 + $0x68] sm:$0xff] %vm1736, %v1667
      %1751 = vst.msk [vmem:[%s254 + $0x70] sm:$0xff] %vm1736, %v1669
      %1752 = vst.msk [vmem:[%s254 + $0x78] sm:$0xff] %vm1736, %v1671
      %1753 = vst.msk [vmem:[%s254 + $0x80] sm:$0xff] %vm1736, %v1673
      %1754 = vst.msk [vmem:[%s254 + $0x88] sm:$0xff] %vm1736, %v1675
      %1755 = vst.msk [vmem:[%s254 + $0x90] sm:$0xff] %vm1736, %v1677
      %1756 = vst.msk [vmem:[%s254 + $0x98] sm:$0xff] %vm1736, %v1679
      %1757 = vst.msk [vmem:[%s254 + $0xa0] sm:$0xff] %vm1736, %v1681
      %1758 = vst.msk [vmem:[%s254 + $0xa8] sm:$0xff] %vm1736, %v1683
      %1759 = vst.msk [vmem:[%s254 + $0xb0] sm:$0xff] %vm1736, %v1685
      %1760 = vst.msk [vmem:[%s254 + $0xb8] sm:$0xff] %vm1736, %v1687
      %1761 = vst.msk [vmem:[%s254 + $0xc0] sm:$0xff] %vm1736, %v1689
      %1762 = vst.msk [vmem:[%s254 + $0xc8] sm:$0xff] %vm1736, %v1691
      %1763 = vst.msk [vmem:[%s254 + $0xd0] sm:$0xff] %vm1736, %v1693
      %1764 = vst.msk [vmem:[%s254 + $0xd8] sm:$0xff] %vm1736, %v1695
      %1765 = vst.msk [vmem:[%s254 + $0xe0] sm:$0xff] %vm1736, %v1697
      %1766 = vst.msk [vmem:[%s254 + $0xe8] sm:$0xff] %vm1736, %v1699
      %1767 = vst.msk [vmem:[%s254 + $0xf0] sm:$0xff] %vm1736, %v1701
      %1768 = vst.msk [vmem:[%s254 + $0xf8] sm:$0xff] %vm1736, %v1703
      %s1769 = smul.u32 32, %s18
      %p1770 = scmp.lt.s32.totalorder %s1769, 63
      %s1771 = scalar_select %p1770, %s1769, 63
      %s1772 = smul.addr %s1771, 8
      %s1773 = scalar_lea.vmem %s6, %s1772
      // Predicated region
      $region45: #{tpu_custom_call.1} parent=43 // pred_check
        %p1774 = pneg %p167
      $region46: #{tpu_custom_call.1} parent=43 // pred_check_branch
        %1776 = sbr.rel (%p1774) target = $region48
      $region47: #{tpu_custom_call.1} parent=43 // pred_region
        %s1777 = smul.u32 32, %s18
      $region48: #{tpu_custom_call.1} parent=43 // pred_fallthru
        _
    $region44: #{tpu_custom_call.1} parent=5 // pred_fallthru
      _
    %p1778 = scmp.le.s32.totalorder 2, %s13
    // Predicated region
    $region49: #{tpu_custom_call.1} parent=5 // pred_check
      %p1779 = pneg %p1778
    $region50: #{tpu_custom_call.1} parent=5 // pred_check_branch
      %1781 = sbr.rel (%p1779) target = $region52
    $region51: #{tpu_custom_call.1} parent=5 // pred_region
      %s1782 = ssub.s32 %s13, 2
      // Predicated region
      $region53: #{tpu_custom_call.1} parent=51 // pred_check
        %p1783 = pneg %p173
      $region54: #{tpu_custom_call.1} parent=51 // pred_check_branch
        %1785 = sbr.rel (%p1783) target = $region56
      $region55: #{tpu_custom_call.1} parent=51 // pred_region
        %s1786 = smul.u32 32, %s19
        %p1787 = scmp.lt.s32.totalorder %s1786, 63
        %s1788 = scalar_select %p1787, %s1786, 63
        %s1789 = smul.addr %s1788, 8
        %s1790 = scalar_lea.vmem %s6, %s1789
      $region56: #{tpu_custom_call.1} parent=51 // pred_fallthru
        _
    $region52: #{tpu_custom_call.1} parent=5 // pred_fallthru
      _
  $region6: #{tpu_custom_call.1} parent=0 // loop_footer
    %s17 = sadd.s32 1, %s13
  $region7: #{tpu_custom_call.1} parent=0 // loop_footer_branch
    %12 = sbr.rel target = $region3
  $region8: #{tpu_custom_call.1} parent=0 // loop_exit
    _

</llo_original>
